<compile_context>
chip_gen: v7x
topology: tpu7x:2x2x1
jax: 0.10.0
libtpu: 0.0.40
codegen_flags: <defaults>
</compile_context>

<pallas_src>
import numpy as np
import jax
import jax.numpy as jnp
from jax import lax
from jax.experimental import pallas as pl
from jax.experimental.pallas import tpu as pltpu

N_QUBITS = 4
KSIZE = 4
STRIDE = 2
MAX_TM = 4096          # lane-tile cap (multiple of 128); keeps per-step VMEM to a few MiB


def _round_up(x, m):
    return ((x + m - 1) // m) * m


# Row layout of the kernel's angle input: row g*4 + q holds 0.5 * angle(gate g, qubit q).
# Qubit 3 only has the g=0 RZ gate; its rows for g>=1 stay zero (identity rotations).
_ANG_ROWS = 5 * N_QUBITS                      # 20
_SRC = np.zeros((_ANG_ROWS,), np.int32)       # source feature index in the flattened 4x4 patch
_VALID = np.zeros((_ANG_ROWS, 1), np.float32)
for _g in range(5):
    for _q in range(N_QUBITS):
        _f = _q * 5 + _g
        if _f < 16:
            _SRC[_g * 4 + _q] = _f
            _VALID[_g * 4 + _q, 0] = 1.0


def inception_kernel(ang_ref, wcp_ref, bc_ref, ub_ref, zs_ref, out_ref):
    ang = ang_ref[...]                                   # (20, TM): pre-halved angles, patch on lanes
    tm = ang.shape[1]

    # ------------- classic branch: folded 1x1 conv + 4x4/stride-2 conv, one MXU dot -------------
    classic = jnp.dot(wcp_ref[...], ang, preferred_element_type=jnp.float32)   # (12, TM)

    # ------------- quantum branch: exact 4-qubit statevector simulation -------------------------
    c_all = jnp.cos(ang)                                 # two full-tile EUP pushes
    s_all = jnp.sin(ang)

    inv_sqrt2 = 0.7071067811865476
    # per-qubit |0>/|1> amplitudes after H; qubit index on the SUBLANE axis: (4, TM) each
    sr = jnp.full((4, tm), inv_sqrt2, jnp.float32)
    si = jnp.zeros((4, tm), jnp.float32)
    tr = jnp.full((4, tm), inv_sqrt2, jnp.float32)
    ti = jnp.zeros((4, tm), jnp.float32)
    for g in range(5):                                   # all 4 qubits updated per gate step
        c = c_all[4 * g:4 * g + 4, :]
        s = s_all[4 * g:4 * g + 4, :]
        if g % 2 == 0:                                   # RZ: diag(e^{-ia/2}, e^{+ia/2})
            sr, si = sr * c + si * s, si * c - sr * s
            tr, ti = tr * c - ti * s, ti * c + tr * s
        else:                                            # RY: [[c,-s],[s,c]]
            sr, si, tr, ti = (c * sr - s * tr, c * si - s * ti,
                              s * sr + c * tr, s * si + c * ti)

    # tensor product of the four single-qubit states; basis index k on sublanes, wire 0 = MSB
    row = lax.broadcasted_iota(jnp.int32, (16, tm), 0)
    psi_r = None
    psi_i = None
    for q in range(4):
        pick0 = ((row >> (3 - q)) & 1) == 0
        qr = jnp.where(pick0, sr[q:q + 1, :], tr[q:q + 1, :])   # (1, TM) sublane-broadcast
        qi = jnp.where(pick0, si[q:q + 1, :], ti[q:q + 1, :])
        if q == 0:
            psi_r, psi_i = qr, qi
        else:
            psi_r, psi_i = psi_r * qr - psi_i * qi, psi_r * qi + psi_i * qr

    # fixed (weights-only) circuit unitary: one (32,32) @ (32,TM) dot; sublane concat is layout-free
    psi = jnp.concatenate([psi_r, psi_i], axis=0)        # (32, TM)
    upsi = jnp.dot(ub_ref[...], psi, preferred_element_type=jnp.float32)
    pr = upsi[:16, :]
    pi = upsi[16:, :]
    probs = pr * pr + pi * pi                            # (16, TM) basis-state probabilities

    # PauliZ expectations, placed directly into output rows 8..11 by the sign matrix
    zq = jnp.dot(zs_ref[...], probs, preferred_element_type=jnp.float32)       # (12, TM)

    out_ref[...] = classic + zq + bc_ref[...]            # single lane-dense (12, TM) store


def extract_patches(x):
    """Shared im2col: 4x4 windows, stride 2; rows in torch.flatten(start_dim=1) order."""
    N, C, H, W = x.shape
    p = lax.conv_general_dilated_patches(
        x, filter_shape=(KSIZE, KSIZE), window_strides=(STRIDE, STRIDE),
        padding='VALID', dimension_numbers=('NCHW', 'OIHW', 'NCHW'))
    _, F, OH, OW = p.shape                               # feature index = c*16 + kh*4 + kw
    A = p.transpose(0, 2, 3, 1).reshape(N * OH * OW, F)
    return A.astype(jnp.float32), OH, OW


def build_fixed_unitary(wq):
    """16x16 unitary of the trainable part of the circuit: CRZ ring then RY layer."""
    w = np.asarray(wq, dtype=np.float64)[0]              # (8,)
    diag = np.ones(16, dtype=np.complex128)
    for idx, (c, t) in enumerate([(0, 1), (1, 2), (2, 3), (3, 0)]):
        th = w[idx]
        for k in range(16):
            if (k >> (3 - c)) & 1:
                diag[k] *= np.exp(-0.5j * th) if ((k >> (3 - t)) & 1) == 0 else np.exp(0.5j * th)

    def ry(t):
        return np.array([[np.cos(t / 2), -np.sin(t / 2)],
                         [np.sin(t / 2), np.cos(t / 2)]], dtype=np.complex128)

    full = ry(w[4])
    for q in range(1, 4):
        full = np.kron(full, ry(w[4 + q]))
    return full @ np.diag(diag)


def inception_forward(x, params):
    w1, b1, w2, b2, wq = params
    N, C, H, W = x.shape
    assert C * KSIZE * KSIZE == 16, "quantum encoding assumes in_channels == 1 (16 angles)"
    OH = (H - KSIZE) // STRIDE + 1
    OW = (W - KSIZE) // STRIDE + 1
    M = N * OH * OW

    # ------- patches with the patch index on the LANE axis: A_T is (16, M) -------
    p = lax.conv_general_dilated_patches(
        x, filter_shape=(KSIZE, KSIZE), window_strides=(STRIDE, STRIDE),
        padding='VALID', dimension_numbers=('NCHW', 'OIHW', 'NCHW'))
    A_T = p.transpose(1, 0, 2, 3).reshape(C * 16, M).astype(jnp.float32)

    # ------- lane tiling: TM multiple of 128, capped so large batches stay multi-step -------
    TM = min(_round_up(M, 128), MAX_TM)
    Mp = _round_up(M, TM)

    # gate-major (20, Mp) half-angle tile; padded lanes stay zero (finite math, sliced off later)
    ang = 0.5 * A_T[jnp.asarray(_SRC), :] * jnp.asarray(_VALID)
    ang = jnp.pad(ang, ((0, 0), (0, Mp - M)))

    # ------- fold the classic branch into one (12, 20) weight (rows 8-11 zero) + (12, 1) bias ----
    w1m = w1[:, :, 0, 0].astype(jnp.float32)                                    # (4, C)
    wc_full = jnp.einsum('oikl,ic->ockl', w2.astype(jnp.float32), w1m)          # (8, C, 4, 4)
    wc_flat = wc_full.reshape(8, C * 16)                                        # (8, 16)
    bcls = (w2.astype(jnp.float32).sum(axis=(2, 3)) @ b1.astype(jnp.float32)
            + b2.astype(jnp.float32))                                           # (8,)
    # permute weight columns to the ang row order; x2 undoes the 0.5 angle pre-scaling
    wcp = jnp.zeros((12, _ANG_ROWS), jnp.float32)
    wcp = wcp.at[:8].set(2.0 * wc_flat[:, jnp.asarray(_SRC)] * jnp.asarray(_VALID).T)
    bc12 = jnp.concatenate([bcls, jnp.zeros((4,), jnp.float32)])[:, None]       # (12, 1)

    # ------- fixed circuit unitary as a real (32, 32) block matrix (left-multiply form) -------
    U = build_fixed_unitary(wq)
    ub = jnp.asarray(np.block([[U.real, -U.imag], [U.imag, U.real]]), jnp.float32)

    # PauliZ sign matrix: rows 8..11 hold the per-wire signs, rows 0-7 zero
    zs_np = np.zeros((12, 16), np.float32)
    for k in range(16):
        for q in range(N_QUBITS):
            zs_np[8 + q, k] = 1.0 - 2.0 * ((k >> (3 - q)) & 1)
    zs = jnp.asarray(zs_np)

    const = lambda i: (0, 0)
    out_T = pl.pallas_call(
        inception_kernel,
        out_shape=jax.ShapeDtypeStruct((12, Mp), jnp.float32),
        grid=(Mp // TM,),
        in_specs=[
            pl.BlockSpec((_ANG_ROWS, TM), lambda i: (0, i)),
            pl.BlockSpec((12, _ANG_ROWS), const),
            pl.BlockSpec((12, 1), const),
            pl.BlockSpec((32, 32), const),
            pl.BlockSpec((12, 16), const),
        ],
        out_specs=pl.BlockSpec((12, TM), lambda i: (0, i)),
        compiler_params=pltpu.CompilerParams(dimension_semantics=("parallel",)),
    )(ang, wcp, bc12, ub, zs)

    out_T = out_T[:, :M]
    classic = out_T[:8].reshape(8, N, OH, OW).transpose(1, 0, 2, 3)             # (N, 8, 6, 6)
    quantum = out_T[8:12].T.reshape(N, OH * OW * 4).reshape(N, 4, OH, OW)       # torch .view order
    return jnp.concatenate([classic, quantum], axis=1)                          # (N, 12, 6, 6)


# ------------------------------- independent reference ---------------------------------------
def _np_quantum_ref(A_np, wq_np):
    M = A_np.shape[0]
    Hg = np.array([[1, 1], [1, -1]], dtype=np.complex128) / np.sqrt(2)

    def RZ(t):
        return np.array([[np.exp(-0.5j * t), 0], [0, np.exp(0.5j * t)]], dtype=np.complex128)

    def RY(t):
        return np.array([[np.cos(t / 2), -np.sin(t / 2)],
                         [np.sin(t / 2), np.cos(t / 2)]], dtype=np.complex128)

    def on_wire(g, wire):
        ops = [np.eye(2, dtype=np.complex128)] * 4
        ops[wire] = g
        f = ops[0]
        for o in ops[1:]:
            f = np.kron(f, o)
        return f

    def CRZ(t, c, tg):
        d = np.ones(16, dtype=np.complex128)
        for k in range(16):
            if (k >> (3 - c)) & 1:
                d[k] = np.exp(-0.5j * t) if ((k >> (3 - tg)) & 1) == 0 else np.exp(0.5j * t)
        return np.diag(d)

    enc = ['RZ', 'RY'] * 3
    out = np.zeros((M, 4))
    for m in range(M):
        psi = np.zeros(16, dtype=np.complex128)
        psi[0] = 1.0
        inputs = A_np[m]
        for q in range(4):
            psi = on_wire(Hg, q) @ psi
            for i in range(5):
                idx = q * 5 + i
                if idx < 16:
                    g = RZ(inputs[idx]) if enc[i] == 'RZ' else RY(inputs[idx])
                    psi = on_wire(g, q) @ psi
        for i in range(4):
            psi = CRZ(wq_np[0, i], i, (i + 1) % 4) @ psi
        for j in range(4, 8):
            psi = on_wire(RY(wq_np[0, j]), j % 4) @ psi
        p = np.abs(psi) ** 2
        for q in range(4):
            z = np.array([1 - 2 * ((k >> (3 - q)) & 1) for k in range(16)], dtype=np.float64)
            out[m, q] = p @ z
    return out


def reference_forward(x, params):
    w1, b1, w2, b2, wq = params
    y1 = lax.conv_general_dilated(x, w1, (1, 1), 'VALID',
                                  dimension_numbers=('NCHW', 'OIHW', 'NCHW')) \
        + b1[None, :, None, None]
    classic = lax.conv_general_dilated(y1, w2, (2, 2), 'VALID',
                                       dimension_numbers=('NCHW', 'OIHW', 'NCHW')) \
        + b2[None, :, None, None]
    A, OH, OW = extract_patches(x)
    q_np = _np_quantum_ref(np.asarray(A, np.float64), np.asarray(wq, np.float64))
    N = x.shape[0]
    quantum = jnp.asarray(q_np, jnp.float32).reshape(N, OH * OW * 4).reshape(N, 4, OH, OW)
    return jnp.concatenate([classic, quantum], axis=1)


if __name__ == "__main__":
    key = jax.random.PRNGKey(0)
    k_x, k_w1, k_b1, k_w2, k_b2, k_q = jax.random.split(key, 6)
    N, C, H, W = 2, 1, 14, 14                 # 14x14 input -> 6x6 outputs in both branches
    x = jax.random.normal(k_x, (N, C, H, W), jnp.float32)

    # deterministic synthetic parameters (shapes from the module __init__)
    w1 = jax.random.normal(k_w1, (4, C, 1, 1), jnp.float32) * 0.5     # branchClassic_1
    b1 = jax.random.normal(k_b1, (4,), jnp.float32) * 0.1
    w2 = jax.random.normal(k_w2, (8, 4, 4, 4), jnp.float32) * 0.2     # branchClassic_2
    b2 = jax.random.normal(k_b2, (8,), jnp.float32) * 0.1
    wq = jax.random.uniform(k_q, (1, 2 * N_QUBITS), jnp.float32, 0.0, 2.0 * np.pi)
    params = (w1, b1, w2, b2, wq)

    out = jax.block_until_ready(inception_forward(x, params))
    assert out.shape == (N, 12, 6, 6)

    ref = reference_forward(x, params)
    np.testing.assert_allclose(np.asarray(out), np.asarray(ref), atol=3e-3, rtol=3e-3)

    print("KERNEL_OK")
</pallas_src>

<mosaic_0001>
module attributes {stable_mosaic.version = 11 : i64} {
  func.func @inception_kernel(%arg0: i32, %arg1: memref<20x128xf32, #tpu.memory_space<vmem>>, %arg2: memref<12x20xf32, #tpu.memory_space<vmem>>, %arg3: memref<12x1xf32, #tpu.memory_space<vmem>>, %arg4: memref<32x32xf32, #tpu.memory_space<vmem>>, %arg5: memref<12x16xf32, #tpu.memory_space<vmem>>, %arg6: memref<12x128xf32, #tpu.memory_space<vmem>>) attributes {dimension_semantics = [#tpu.dimension_semantics<parallel>], iteration_bounds = array<i64: 1>, scalar_prefetch = 0 : i64, scratch_operands = 0 : i64, tpu.core_type = #tpu.core_type<tc>, window_params = [{transform_indices = @transform_0, window_bounds = array<i64: 20, 128>}, {pipeline_mode = #tpu.pipeline_mode<synchronous>, transform_indices = @transform_1, window_bounds = array<i64: 12, 20>}, {pipeline_mode = #tpu.pipeline_mode<synchronous>, transform_indices = @transform_2, window_bounds = array<i64: 12, 1>}, {pipeline_mode = #tpu.pipeline_mode<synchronous>, transform_indices = @transform_3, window_bounds = array<i64: 32, 32>}, {pipeline_mode = #tpu.pipeline_mode<synchronous>, transform_indices = @transform_4, window_bounds = array<i64: 12, 16>}, {transform_indices = @transform_5, window_bounds = array<i64: 12, 128>}]} {
    %c0 = arith.constant 0 : index
    %c0_0 = arith.constant 0 : index
    %0 = vector.load %arg1[%c0, %c0_0] : memref<20x128xf32, #tpu.memory_space<vmem>>, vector<20x128xf32>
    %c0_1 = arith.constant 0 : index
    %c0_2 = arith.constant 0 : index
    %1 = vector.load %arg2[%c0_1, %c0_2] : memref<12x20xf32, #tpu.memory_space<vmem>>, vector<12x20xf32>
    %cst = arith.constant dense<0.000000e+00> : vector<12x128xf32>
    %2 = tpu.matmul %1, %0, %cst {dimension_numbers = #tpu.dot_dimension_numbers<[1], [0], [0], [1], [0, 0, 1, 1], [], []>} : vector<12x20xf32>, vector<20x128xf32>, vector<12x128xf32> -> vector<12x128xf32>
    %3 = math.cos %0 : vector<20x128xf32>
    %4 = math.sin %0 : vector<20x128xf32>
    %cst_3 = arith.constant 0.707106769 : f32
    %5 = vector.broadcast %cst_3 : f32 to vector<4x128xf32>
    %cst_4 = arith.constant 0.000000e+00 : f32
    %6 = vector.broadcast %cst_4 : f32 to vector<4x128xf32>
    %cst_5 = arith.constant 0.707106769 : f32
    %7 = vector.broadcast %cst_5 : f32 to vector<4x128xf32>
    %cst_6 = arith.constant 0.000000e+00 : f32
    %8 = vector.broadcast %cst_6 : f32 to vector<4x128xf32>
    %9 = vector.extract_strided_slice %3 {offsets = [0, 0], sizes = [4, 128], strides = [1, 1]} : vector<20x128xf32> to vector<4x128xf32>
    %10 = vector.extract_strided_slice %4 {offsets = [0, 0], sizes = [4, 128], strides = [1, 1]} : vector<20x128xf32> to vector<4x128xf32>
    %11 = arith.mulf %5, %9 : vector<4x128xf32>
    %12 = arith.mulf %6, %10 : vector<4x128xf32>
    %13 = arith.addf %11, %12 : vector<4x128xf32>
    %14 = arith.mulf %6, %9 : vector<4x128xf32>
    %15 = arith.mulf %5, %10 : vector<4x128xf32>
    %16 = arith.subf %14, %15 : vector<4x128xf32>
    %17 = arith.mulf %7, %9 : vector<4x128xf32>
    %18 = arith.mulf %8, %10 : vector<4x128xf32>
    %19 = arith.subf %17, %18 : vector<4x128xf32>
    %20 = arith.mulf %8, %9 : vector<4x128xf32>
    %21 = arith.mulf %7, %10 : vector<4x128xf32>
    %22 = arith.addf %20, %21 : vector<4x128xf32>
    %23 = vector.extract_strided_slice %3 {offsets = [4, 0], sizes = [4, 128], strides = [1, 1]} : vector<20x128xf32> to vector<4x128xf32>
    %24 = vector.extract_strided_slice %4 {offsets = [4, 0], sizes = [4, 128], strides = [1, 1]} : vector<20x128xf32> to vector<4x128xf32>
    %25 = arith.mulf %23, %13 : vector<4x128xf32>
    %26 = arith.mulf %24, %19 : vector<4x128xf32>
    %27 = arith.subf %25, %26 : vector<4x128xf32>
    %28 = arith.mulf %23, %16 : vector<4x128xf32>
    %29 = arith.mulf %24, %22 : vector<4x128xf32>
    %30 = arith.subf %28, %29 : vector<4x128xf32>
    %31 = arith.mulf %24, %13 : vector<4x128xf32>
    %32 = arith.mulf %23, %19 : vector<4x128xf32>
    %33 = arith.addf %31, %32 : vector<4x128xf32>
    %34 = arith.mulf %24, %16 : vector<4x128xf32>
    %35 = arith.mulf %23, %22 : vector<4x128xf32>
    %36 = arith.addf %34, %35 : vector<4x128xf32>
    %37 = vector.extract_strided_slice %3 {offsets = [8, 0], sizes = [4, 128], strides = [1, 1]} : vector<20x128xf32> to vector<4x128xf32>
    %38 = vector.extract_strided_slice %4 {offsets = [8, 0], sizes = [4, 128], strides = [1, 1]} : vector<20x128xf32> to vector<4x128xf32>
    %39 = arith.mulf %27, %37 : vector<4x128xf32>
    %40 = arith.mulf %30, %38 : vector<4x128xf32>
    %41 = arith.addf %39, %40 : vector<4x128xf32>
    %42 = arith.mulf %30, %37 : vector<4x128xf32>
    %43 = arith.mulf %27, %38 : vector<4x128xf32>
    %44 = arith.subf %42, %43 : vector<4x128xf32>
    %45 = arith.mulf %33, %37 : vector<4x128xf32>
    %46 = arith.mulf %36, %38 : vector<4x128xf32>
    %47 = arith.subf %45, %46 : vector<4x128xf32>
    %48 = arith.mulf %36, %37 : vector<4x128xf32>
    %49 = arith.mulf %33, %38 : vector<4x128xf32>
    %50 = arith.addf %48, %49 : vector<4x128xf32>
    %51 = vector.extract_strided_slice %3 {offsets = [12, 0], sizes = [4, 128], strides = [1, 1]} : vector<20x128xf32> to vector<4x128xf32>
    %52 = vector.extract_strided_slice %4 {offsets = [12, 0], sizes = [4, 128], strides = [1, 1]} : vector<20x128xf32> to vector<4x128xf32>
    %53 = arith.mulf %51, %41 : vector<4x128xf32>
    %54 = arith.mulf %52, %47 : vector<4x128xf32>
    %55 = arith.subf %53, %54 : vector<4x128xf32>
    %56 = arith.mulf %51, %44 : vector<4x128xf32>
    %57 = arith.mulf %52, %50 : vector<4x128xf32>
    %58 = arith.subf %56, %57 : vector<4x128xf32>
    %59 = arith.mulf %52, %41 : vector<4x128xf32>
    %60 = arith.mulf %51, %47 : vector<4x128xf32>
    %61 = arith.addf %59, %60 : vector<4x128xf32>
    %62 = arith.mulf %52, %44 : vector<4x128xf32>
    %63 = arith.mulf %51, %50 : vector<4x128xf32>
    %64 = arith.addf %62, %63 : vector<4x128xf32>
    %65 = vector.extract_strided_slice %3 {offsets = [16, 0], sizes = [4, 128], strides = [1, 1]} : vector<20x128xf32> to vector<4x128xf32>
    %66 = vector.extract_strided_slice %4 {offsets = [16, 0], sizes = [4, 128], strides = [1, 1]} : vector<20x128xf32> to vector<4x128xf32>
    %67 = arith.mulf %55, %65 : vector<4x128xf32>
    %68 = arith.mulf %58, %66 : vector<4x128xf32>
    %69 = arith.addf %67, %68 : vector<4x128xf32>
    %70 = arith.mulf %58, %65 : vector<4x128xf32>
    %71 = arith.mulf %55, %66 : vector<4x128xf32>
    %72 = arith.subf %70, %71 : vector<4x128xf32>
    %73 = arith.mulf %61, %65 : vector<4x128xf32>
    %74 = arith.mulf %64, %66 : vector<4x128xf32>
    %75 = arith.subf %73, %74 : vector<4x128xf32>
    %76 = arith.mulf %64, %65 : vector<4x128xf32>
    %77 = arith.mulf %61, %66 : vector<4x128xf32>
    %78 = arith.addf %76, %77 : vector<4x128xf32>
    %79 = tpu.iota {dimensions = array<i32: 0>} : vector<16x128xi32>
    %c3_i32 = arith.constant 3 : i32
    %80 = vector.broadcast %c3_i32 : i32 to vector<16x128xi32>
    %81 = arith.shrsi %79, %80 : vector<16x128xi32>
    %c1_i32 = arith.constant 1 : i32
    %82 = vector.broadcast %c1_i32 : i32 to vector<16x128xi32>
    %83 = arith.andi %81, %82 : vector<16x128xi32>
    %c0_i32 = arith.constant 0 : i32
    %84 = vector.broadcast %c0_i32 : i32 to vector<16x128xi32>
    %85 = arith.cmpi eq, %83, %84 : vector<16x128xi32>
    %86 = vector.extract_strided_slice %69 {offsets = [0, 0], sizes = [1, 128], strides = [1, 1]} : vector<4x128xf32> to vector<1x128xf32>
    %87 = vector.extract_strided_slice %75 {offsets = [0, 0], sizes = [1, 128], strides = [1, 1]} : vector<4x128xf32> to vector<1x128xf32>
    %88 = vector.shape_cast %86 : vector<1x128xf32> to vector<1x128xf32>
    %89 = vector.broadcast %88 : vector<1x128xf32> to vector<16x128xf32>
    %90 = vector.shape_cast %87 : vector<1x128xf32> to vector<1x128xf32>
    %91 = vector.broadcast %90 : vector<1x128xf32> to vector<16x128xf32>
    %92 = arith.select %85, %89, %91 : vector<16x128xi1>, vector<16x128xf32>
    %93 = vector.extract_strided_slice %72 {offsets = [0, 0], sizes = [1, 128], strides = [1, 1]} : vector<4x128xf32> to vector<1x128xf32>
    %94 = vector.extract_strided_slice %78 {offsets = [0, 0], sizes = [1, 128], strides = [1, 1]} : vector<4x128xf32> to vector<1x128xf32>
    %95 = vector.shape_cast %93 : vector<1x128xf32> to vector<1x128xf32>
    %96 = vector.broadcast %95 : vector<1x128xf32> to vector<16x128xf32>
    %97 = vector.shape_cast %94 : vector<1x128xf32> to vector<1x128xf32>
    %98 = vector.broadcast %97 : vector<1x128xf32> to vector<16x128xf32>
    %99 = arith.select %85, %96, %98 : vector<16x128xi1>, vector<16x128xf32>
    %c2_i32 = arith.constant 2 : i32
    %100 = vector.broadcast %c2_i32 : i32 to vector<16x128xi32>
    %101 = arith.shrsi %79, %100 : vector<16x128xi32>
    %c1_i32_7 = arith.constant 1 : i32
    %102 = vector.broadcast %c1_i32_7 : i32 to vector<16x128xi32>
    %103 = arith.andi %101, %102 : vector<16x128xi32>
    %c0_i32_8 = arith.constant 0 : i32
    %104 = vector.broadcast %c0_i32_8 : i32 to vector<16x128xi32>
    %105 = arith.cmpi eq, %103, %104 : vector<16x128xi32>
    %106 = vector.extract_strided_slice %69 {offsets = [1, 0], sizes = [1, 128], strides = [1, 1]} : vector<4x128xf32> to vector<1x128xf32>
    %107 = vector.extract_strided_slice %75 {offsets = [1, 0], sizes = [1, 128], strides = [1, 1]} : vector<4x128xf32> to vector<1x128xf32>
    %108 = vector.shape_cast %106 : vector<1x128xf32> to vector<1x128xf32>
    %109 = vector.broadcast %108 : vector<1x128xf32> to vector<16x128xf32>
    %110 = vector.shape_cast %107 : vector<1x128xf32> to vector<1x128xf32>
    %111 = vector.broadcast %110 : vector<1x128xf32> to vector<16x128xf32>
    %112 = arith.select %105, %109, %111 : vector<16x128xi1>, vector<16x128xf32>
    %113 = vector.extract_strided_slice %72 {offsets = [1, 0], sizes = [1, 128], strides = [1, 1]} : vector<4x128xf32> to vector<1x128xf32>
    %114 = vector.extract_strided_slice %78 {offsets = [1, 0], sizes = [1, 128], strides = [1, 1]} : vector<4x128xf32> to vector<1x128xf32>
    %115 = vector.shape_cast %113 : vector<1x128xf32> to vector<1x128xf32>
    %116 = vector.broadcast %115 : vector<1x128xf32> to vector<16x128xf32>
    %117 = vector.shape_cast %114 : vector<1x128xf32> to vector<1x128xf32>
    %118 = vector.broadcast %117 : vector<1x128xf32> to vector<16x128xf32>
    %119 = arith.select %105, %116, %118 : vector<16x128xi1>, vector<16x128xf32>
    %120 = arith.mulf %92, %112 : vector<16x128xf32>
    %121 = arith.mulf %99, %119 : vector<16x128xf32>
    %122 = arith.subf %120, %121 : vector<16x128xf32>
    %123 = arith.mulf %92, %119 : vector<16x128xf32>
    %124 = arith.mulf %99, %112 : vector<16x128xf32>
    %125 = arith.addf %123, %124 : vector<16x128xf32>
    %c1_i32_9 = arith.constant 1 : i32
    %126 = vector.broadcast %c1_i32_9 : i32 to vector<16x128xi32>
    %127 = arith.shrsi %79, %126 : vector<16x128xi32>
    %c1_i32_10 = arith.constant 1 : i32
    %128 = vector.broadcast %c1_i32_10 : i32 to vector<16x128xi32>
    %129 = arith.andi %127, %128 : vector<16x128xi32>
    %c0_i32_11 = arith.constant 0 : i32
    %130 = vector.broadcast %c0_i32_11 : i32 to vector<16x128xi32>
    %131 = arith.cmpi eq, %129, %130 : vector<16x128xi32>
    %132 = vector.extract_strided_slice %69 {offsets = [2, 0], sizes = [1, 128], strides = [1, 1]} : vector<4x128xf32> to vector<1x128xf32>
    %133 = vector.extract_strided_slice %75 {offsets = [2, 0], sizes = [1, 128], strides = [1, 1]} : vector<4x128xf32> to vector<1x128xf32>
    %134 = vector.shape_cast %132 : vector<1x128xf32> to vector<1x128xf32>
    %135 = vector.broadcast %134 : vector<1x128xf32> to vector<16x128xf32>
    %136 = vector.shape_cast %133 : vector<1x128xf32> to vector<1x128xf32>
    %137 = vector.broadcast %136 : vector<1x128xf32> to vector<16x128xf32>
    %138 = arith.select %131, %135, %137 : vector<16x128xi1>, vector<16x128xf32>
    %139 = vector.extract_strided_slice %72 {offsets = [2, 0], sizes = [1, 128], strides = [1, 1]} : vector<4x128xf32> to vector<1x128xf32>
    %140 = vector.extract_strided_slice %78 {offsets = [2, 0], sizes = [1, 128], strides = [1, 1]} : vector<4x128xf32> to vector<1x128xf32>
    %141 = vector.shape_cast %139 : vector<1x128xf32> to vector<1x128xf32>
    %142 = vector.broadcast %141 : vector<1x128xf32> to vector<16x128xf32>
    %143 = vector.shape_cast %140 : vector<1x128xf32> to vector<1x128xf32>
    %144 = vector.broadcast %143 : vector<1x128xf32> to vector<16x128xf32>
    %145 = arith.select %131, %142, %144 : vector<16x128xi1>, vector<16x128xf32>
    %146 = arith.mulf %122, %138 : vector<16x128xf32>
    %147 = arith.mulf %125, %145 : vector<16x128xf32>
    %148 = arith.subf %146, %147 : vector<16x128xf32>
    %149 = arith.mulf %122, %145 : vector<16x128xf32>
    %150 = arith.mulf %125, %138 : vector<16x128xf32>
    %151 = arith.addf %149, %150 : vector<16x128xf32>
    %c0_i32_12 = arith.constant 0 : i32
    %152 = vector.broadcast %c0_i32_12 : i32 to vector<16x128xi32>
    %153 = arith.shrsi %79, %152 : vector<16x128xi32>
    %c1_i32_13 = arith.constant 1 : i32
    %154 = vector.broadcast %c1_i32_13 : i32 to vector<16x128xi32>
    %155 = arith.andi %153, %154 : vector<16x128xi32>
    %c0_i32_14 = arith.constant 0 : i32
    %156 = vector.broadcast %c0_i32_14 : i32 to vector<16x128xi32>
    %157 = arith.cmpi eq, %155, %156 : vector<16x128xi32>
    %158 = vector.extract_strided_slice %69 {offsets = [3, 0], sizes = [1, 128], strides = [1, 1]} : vector<4x128xf32> to vector<1x128xf32>
    %159 = vector.extract_strided_slice %75 {offsets = [3, 0], sizes = [1, 128], strides = [1, 1]} : vector<4x128xf32> to vector<1x128xf32>
    %160 = vector.shape_cast %158 : vector<1x128xf32> to vector<1x128xf32>
    %161 = vector.broadcast %160 : vector<1x128xf32> to vector<16x128xf32>
    %162 = vector.shape_cast %159 : vector<1x128xf32> to vector<1x128xf32>
    %163 = vector.broadcast %162 : vector<1x128xf32> to vector<16x128xf32>
    %164 = arith.select %157, %161, %163 : vector<16x128xi1>, vector<16x128xf32>
    %165 = vector.extract_strided_slice %72 {offsets = [3, 0], sizes = [1, 128], strides = [1, 1]} : vector<4x128xf32> to vector<1x128xf32>
    %166 = vector.extract_strided_slice %78 {offsets = [3, 0], sizes = [1, 128], strides = [1, 1]} : vector<4x128xf32> to vector<1x128xf32>
    %167 = vector.shape_cast %165 : vector<1x128xf32> to vector<1x128xf32>
    %168 = vector.broadcast %167 : vector<1x128xf32> to vector<16x128xf32>
    %169 = vector.shape_cast %166 : vector<1x128xf32> to vector<1x128xf32>
    %170 = vector.broadcast %169 : vector<1x128xf32> to vector<16x128xf32>
    %171 = arith.select %157, %168, %170 : vector<16x128xi1>, vector<16x128xf32>
    %172 = arith.mulf %148, %164 : vector<16x128xf32>
    %173 = arith.mulf %151, %171 : vector<16x128xf32>
    %174 = arith.subf %172, %173 : vector<16x128xf32>
    %175 = arith.mulf %148, %171 : vector<16x128xf32>
    %176 = arith.mulf %151, %164 : vector<16x128xf32>
    %177 = arith.addf %175, %176 : vector<16x128xf32>
    %178 = tpu.concatenate %174, %177 in 0 : vector<16x128xf32>, vector<16x128xf32> -> vector<32x128xf32>
    %c0_15 = arith.constant 0 : index
    %c0_16 = arith.constant 0 : index
    %179 = vector.load %arg4[%c0_15, %c0_16] : memref<32x32xf32, #tpu.memory_space<vmem>>, vector<32x32xf32>
    %cst_17 = arith.constant dense<0.000000e+00> : vector<32x128xf32>
    %180 = tpu.matmul %179, %178, %cst_17 {dimension_numbers = #tpu.dot_dimension_numbers<[1], [0], [0], [1], [0, 0, 1, 1], [], []>} : vector<32x32xf32>, vector<32x128xf32>, vector<32x128xf32> -> vector<32x128xf32>
    %181 = vector.extract_strided_slice %180 {offsets = [0, 0], sizes = [16, 128], strides = [1, 1]} : vector<32x128xf32> to vector<16x128xf32>
    %182 = vector.extract_strided_slice %180 {offsets = [16, 0], sizes = [16, 128], strides = [1, 1]} : vector<32x128xf32> to vector<16x128xf32>
    %183 = arith.mulf %181, %181 : vector<16x128xf32>
    %184 = arith.mulf %182, %182 : vector<16x128xf32>
    %185 = arith.addf %183, %184 : vector<16x128xf32>
    %c0_18 = arith.constant 0 : index
    %c0_19 = arith.constant 0 : index
    %186 = vector.load %arg5[%c0_18, %c0_19] : memref<12x16xf32, #tpu.memory_space<vmem>>, vector<12x16xf32>
    %cst_20 = arith.constant dense<0.000000e+00> : vector<12x128xf32>
    %187 = tpu.matmul %186, %185, %cst_20 {dimension_numbers = #tpu.dot_dimension_numbers<[1], [0], [0], [1], [0, 0, 1, 1], [], []>} : vector<12x16xf32>, vector<16x128xf32>, vector<12x128xf32> -> vector<12x128xf32>
    %188 = arith.addf %2, %187 : vector<12x128xf32>
    %c0_21 = arith.constant 0 : index
    %c0_22 = arith.constant 0 : index
    %189 = vector.load %arg3[%c0_21, %c0_22] : memref<12x1xf32, #tpu.memory_space<vmem>>, vector<12x1xf32>
    %190 = vector.broadcast %189 : vector<12x1xf32> to vector<12x128xf32>
    %191 = arith.addf %188, %190 : vector<12x128xf32>
    %c0_23 = arith.constant 0 : index
    %c0_24 = arith.constant 0 : index
    %192 = vector.load %arg6[%c0_23, %c0_24] : memref<12x128xf32, #tpu.memory_space<vmem>>, vector<12x128xf32>
    tpu.vector_store %arg6[%c0_23, %c0_24], %191 {strides = array<i32>} : memref<12x128xf32, #tpu.memory_space<vmem>>, vector<12x128xf32>,
    return
  }
  func.func @transform_0(%arg0: i32) -> (i32, i32) {
    %c0_i32 = arith.constant 0 : i32
    %c0_i32_0 = arith.constant 0 : i32
    return %c0_i32, %arg0 : i32, i32
  }
  func.func @transform_1(%arg0: i32) -> (i32, i32) {
    %c0_i32 = arith.constant 0 : i32
    %c0_i32_0 = arith.constant 0 : i32
    %c0_i32_1 = arith.constant 0 : i32
    return %c0_i32, %c0_i32_0 : i32, i32
  }
  func.func @transform_2(%arg0: i32) -> (i32, i32) {
    %c0_i32 = arith.constant 0 : i32
    %c0_i32_0 = arith.constant 0 : i32
    %c0_i32_1 = arith.constant 0 : i32
    return %c0_i32, %c0_i32_0 : i32, i32
  }
  func.func @transform_3(%arg0: i32) -> (i32, i32) {
    %c0_i32 = arith.constant 0 : i32
    %c0_i32_0 = arith.constant 0 : i32
    %c0_i32_1 = arith.constant 0 : i32
    return %c0_i32, %c0_i32_0 : i32, i32
  }
  func.func @transform_4(%arg0: i32) -> (i32, i32) {
    %c0_i32 = arith.constant 0 : i32
    %c0_i32_0 = arith.constant 0 : i32
    %c0_i32_1 = arith.constant 0 : i32
    return %c0_i32, %c0_i32_0 : i32, i32
  }
  func.func @transform_5(%arg0: i32) -> (i32, i32) {
    %c0_i32 = arith.constant 0 : i32
    %c0_i32_0 = arith.constant 0 : i32
    return %c0_i32, %arg0 : i32, i32
  }
}

</mosaic_0001>

<llo_original>
// kernel: tpu_custom_call.1
$region0: #{tpu_custom_call.1}
  #allocation0 [shape = 'u32[]', space=smem, size = 0x4, offset = 0x4, fixed_abs, tag = 'smem constant byte address 0x4 - core index']
  #allocation1 [shape = 'u32[144,128]{1,0:T(1,128)}', space=vmem, size = 0x12000, scoped, tag = 'internal scratch']
  %s0 = inlined_call_operand.hbm [shape: f32[20,128], index: 0, kind: input, shape index: {}]
  %s1 = inlined_call_operand.vmem [shape: f32[12,20], index: 1, kind: input, shape index: {}]
  %s2 = inlined_call_operand.vmem [shape: f32[12,1], index: 2, kind: input, shape index: {}]
  %s3 = inlined_call_operand.hbm [shape: f32[32,32], index: 3, kind: input, shape index: {}]
  %s4 = inlined_call_operand.vmem [shape: f32[12,16], index: 4, kind: input, shape index: {}]
  %s5 = inlined_call_operand.hbm [shape: f32[12,128], index: 5, kind: output, shape index: {}]
  %s6 = sld [smem:[#allocation0]]
  $region38: #{tpu_custom_call.1} parent=0
    _
  %s8 = ssub.s32 1, %s6
  %s9 = scalar_select 0, %s8, %s6
  $region1: #{tpu_custom_call.1} parent=0
    #allocation2 [shape = 'u8[12288]{0}', space=vmem, size = 0x3000, scoped, tag = 'input window, operand 0, single buffered']
    #allocation3 [shape = 's32[1]{0}', space=sflag, size = 0x4, scoped, tag = 'scoped memory for tpu_custom_call.1']
    #allocation4 [shape = 's32[1]{0}', space=sflag, size = 0x4, scoped, tag = 'scoped memory for tpu_custom_call.1']
    #allocation5 [shape = 'u8[16384]{0}', space=vmem, size = 0x4000, scoped, tag = 'input window, operand 3, single buffered']
    #allocation6 [shape = 's32[1]{0}', space=sflag, size = 0x4, scoped, tag = 'scoped memory for tpu_custom_call.1']
    #allocation7 [shape = 'u8[8192]{0}', space=vmem, size = 0x2000, scoped, tag = 'output window, operand 0, single buffered']
    %10 = vsyncpa [#allocation3], 0
    %11 = vsyncpa [#allocation6], 0
    %12 = vsyncpa [#allocation4], 0
    // Predicated region
    $region2: #{tpu_custom_call.1} parent=1 // pred_check
      _
    $region3: #{tpu_custom_call.1} parent=1 // pred_check_branch
      %14 = sbr.rel (0) target = $region5
    $region4: #{tpu_custom_call.1} parent=1 // pred_region
      %s16 = ssub.s32 384, 384
      %17 = vsyncadd [#allocation3], %s16
      %s18 = sshll.u32 [#allocation2], 4
      %s19 = int_to_ptr.vmem [resolvable:$true] %s18
      %24 = dma.hbm_to_vmem [thread:$0]  %s0, 384, %s19, [#allocation3], 128, 128, 8
    $region5: #{tpu_custom_call.1} parent=1 // pred_fallthru
      _
    // Predicated region
    $region6: #{tpu_custom_call.1} parent=1 // pred_check
      _
    $region7: #{tpu_custom_call.1} parent=1 // pred_check_branch
      %26 = sbr.rel (0) target = $region9
    $region8: #{tpu_custom_call.1} parent=1 // pred_region
      _
    $region9: #{tpu_custom_call.1} parent=1 // pred_fallthru
      _
    // Predicated region
    $region10: #{tpu_custom_call.1} parent=1 // pred_check
      _
    $region11: #{tpu_custom_call.1} parent=1 // pred_check_branch
      %28 = sbr.rel (0) target = $region13
    $region12: #{tpu_custom_call.1} parent=1 // pred_region
      _
    $region13: #{tpu_custom_call.1} parent=1 // pred_fallthru
      _
    // Predicated region
    $region14: #{tpu_custom_call.1} parent=1 // pred_check
      _
    $region15: #{tpu_custom_call.1} parent=1 // pred_check_branch
      %30 = sbr.rel (0) target = $region17
    $region16: #{tpu_custom_call.1} parent=1 // pred_region
      %s32 = ssub.s32 512, 512
      %33 = vsyncadd [#allocation6], %s32
      %s34 = sshll.u32 [#allocation5], 4
      %s35 = int_to_ptr.vmem [resolvable:$true] %s34
      %40 = dma.hbm_to_vmem [thread:$0]  %s3, 512, %s35, [#allocation6], 128, 128, 8
    $region17: #{tpu_custom_call.1} parent=1 // pred_fallthru
      _
    // Predicated region
    $region18: #{tpu_custom_call.1} parent=1 // pred_check
      _
    $region19: #{tpu_custom_call.1} parent=1 // pred_check_branch
      %42 = sbr.rel (0) target = $region21
    $region20: #{tpu_custom_call.1} parent=1 // pred_region
      _
    $region21: #{tpu_custom_call.1} parent=1 // pred_fallthru
      _
    // Predicated region
    $region22: #{tpu_custom_call.1} parent=1 // pred_check
      _
    $region23: #{tpu_custom_call.1} parent=1 // pred_check_branch
      %44 = sbr.rel (0) target = $region25
    $region24: #{tpu_custom_call.1} parent=1 // pred_region
      %45 = dma.done [#allocation3], 384
    $region25: #{tpu_custom_call.1} parent=1 // pred_fallthru
      _
    // Predicated region
    $region26: #{tpu_custom_call.1} parent=1 // pred_check
      _
    $region27: #{tpu_custom_call.1} parent=1 // pred_check_branch
      %47 = sbr.rel (0) target = $region29
    $region28: #{tpu_custom_call.1} parent=1 // pred_region
      %48 = dma.done [#allocation6], 512
    $region29: #{tpu_custom_call.1} parent=1 // pred_fallthru
      _
    %v49 = vld [vmem:[#allocation2] sm:$0xff]
    %v50 = vld [vmem:[#allocation2 + $0x8] sm:$0xff]
    %v51 = vld [vmem:[#allocation2 + $0x10] sm:$0xf]
    %v52 = vld [vmem:[%s1] sm:$0xff]
    %v53 = vld [vmem:[%s1 + $0x8] sm:$0xf]
    %v54 = vand.u32 2147483647, %v49
    %vm55 = vcmp.le.f32.partialorder %v54, 0.7853982
    %vm56 = vcmp.lt.s32.totalorder %v49, 0
    %v57 = vand.u32 %v49, 2139095040
    %v58 = vshrl.u32 %v57, 23
    %v59 = vsub.s32 %v58, 127
    %v60 = vand.u32 2147483647, %v49
    %v61 = vand.u32 %v60, 8388607
    %v62 = vor.u32 %v61, 8388608
    %v63 = vsub.s32 0, %v62
    %v64 = vadd.s32 %v59, 1
    %vm65 = vcmp.gt.s32.totalorder %v64, 0
    %v66 = vsel %vm65, %v64, 0
    %v67 = vshrl.u32 %v66, 5
    %v68 = vand.u32 %v66, 31
    %v69 = vsub.s32 32, %v68
    %v70 = vshrl.u32 683565275, %v69
    %v71 = vshll.u32 683565275, %v68
    %v72 = vshrl.u32 2475754826, %v69
    %v73 = vor.u32 %v71, %v72
    %v74 = vshll.u32 2475754826, %v68
    %v75 = vshrl.u32 2131351028, %v69
    %v76 = vor.u32 %v74, %v75
    %v77 = vshll.u32 2131351028, %v68
    %v78 = vshrl.u32 2102212464, %v69
    %v79 = vor.u32 %v77, %v78
    %v80 = vshll.u32 2102212464, %v68
    %v81 = vshrl.u32 920167782, %v69
    %v82 = vor.u32 %v80, %v81
    %v83 = vshll.u32 920167782, %v68
    %v84 = vshrl.u32 1326507024, %v69
    %v85 = vor.u32 %v83, %v84
    %vm86 = vcmp.lt.s32.totalorder %v67, 1
    %vm87 = vcmp.lt.s32.totalorder %v67, 2
    %vm88 = vcmp.lt.s32.totalorder %v67, 3
    %vm89 = vcmp.lt.s32.totalorder %v67, 4
    %v90 = vsel %vm86, %v70, %v73
    %v91 = vsel %vm89, %v79, 2102212464
    %v92 = vsel %vm88, %v76, %v91
    %v93 = vsel %vm87, %v90, %v92
    %v94 = vsel %vm86, %v73, %v76
    %v95 = vsel %vm89, %v82, 920167782
    %v96 = vsel %vm88, %v79, %v95
    %v97 = vsel %vm87, %v94, %v96
    %v98 = vsel %vm86, %v76, %v79
    %v99 = vsel %vm89, %v85, 1326507024
    %v100 = vsel %vm88, %v82, %v99
    %v101 = vsel %vm87, %v98, %v100
    %v102 = vshll.u32 %v62, 8
    %v103 = vmul.u32.u64.compose %v102, %v101
    %v104 = vextract.low.u32 %v103
    %v105 = vextract.high.u32 %v103
    %v106 = vmul.u32.u64.compose %v102, %v97
    %v107 = vextract.low.u32 %v106
    %v108 = vextract.high.u32 %v106
    %v109 = vmul.u32 %v102, %v93
    %v110 = vadd.s32 %v105, %v107
    %vm111 = vc.u32 %v105, %v107
    %v112 = vadd.s32 %v108, 1
    %v113 = vsel %vm111, %v112, %v108
    %v114 = vadd.s32 %v109, %v113
    %v115 = vadd.s32 %v114, 536870912
    %v116 = vshrl.u32 %v115, 30
    %v117 = vshll.u32 %v116, 30
    %v118 = vsub.s32 %v114, %v117
    %vm119 = vcmp.lt.s32.totalorder %v118, 0
    %v120 = vsub.s32 0, %v118
    %v121 = vsel %vm119, %v120, %v118
    %v122 = vclz %v121
    %v123 = vsub.s32 %v122, 2
    %vm124 = vcmp.gt.s32.totalorder 0, %v123
    %v125 = vsel %vm124, 0, %v123
    %v126 = vsub.s32 32, %v125
    %v127 = vshll.u32 %v118, %v125
    %v128 = vshrl.u32 %v110, %v126
    %v129 = vor.u32 %v127, %v128
    %v130 = vsub.s32 4294967266, %v125
    %v131 = vadd.s32 %v130, 127
    %v132 = vshll.u32 %v131, 23
    %v133 = vor.u32 4788187, %v132
    %v134 = vand.u32 2147483647, %v133
    %v136 = vcvt.s32.f32 %v129
    %v137 = vmul.f32 %v136, %v134
    %v138 = vxor.u32 %v137, 2147483648
    %v139 = vsel %vm56, %v138, %v137
    %v140 = vsub.s32 4, %v116
    %v141 = vsel %vm56, %v140, %v116
    %v142 = vsel %vm55, %v49, %v139
    %v143 = vsel %vm55, 0, %v141
    %v144 = vcosq.f32.pop %v142
    %v145 = vsinq.f32.pop %v142
    %vm146 = vweird.f32 %v49
    %v147 = vand.u32 %v143, 3
    %vm148 = vcmp.lt.s32.totalorder %v147, 2
    %vm149 = vcmp.eq.s32.totalorder %v147, 0
    %v150 = vxor.u32 %v145, 2147483648
    %v151 = vsel %vm149, %v144, %v150
    %vm152 = vcmp.eq.s32.totalorder %v147, 2
    %v153 = vxor.u32 %v144, 2147483648
    %v154 = vsel %vm152, %v153, %v145
    %v155 = vsel %vm148, %v151, %v154
    %v156 = vsel %vm146, nan, %v155
    %v157 = vand.u32 2147483647, %v50
    %vm158 = vcmp.le.f32.partialorder %v157, 0.7853982
    %vm159 = vcmp.lt.s32.totalorder %v50, 0
    %v160 = vand.u32 %v50, 2139095040
    %v161 = vshrl.u32 %v160, 23
    %v162 = vsub.s32 %v161, 127
    %v163 = vand.u32 2147483647, %v50
    %v164 = vand.u32 %v163, 8388607
    %v165 = vor.u32 %v164, 8388608
    %v166 = vsub.s32 0, %v165
    %v167 = vadd.s32 %v162, 1
    %vm168 = vcmp.gt.s32.totalorder %v167, 0
    %v169 = vsel %vm168, %v167, 0
    %v170 = vshrl.u32 %v169, 5
    %v171 = vand.u32 %v169, 31
    %v172 = vsub.s32 32, %v171
    %v173 = vshrl.u32 683565275, %v172
    %v174 = vshll.u32 683565275, %v171
    %v175 = vshrl.u32 2475754826, %v172
    %v176 = vor.u32 %v174, %v175
    %v177 = vshll.u32 2475754826, %v171
    %v178 = vshrl.u32 2131351028, %v172
    %v179 = vor.u32 %v177, %v178
    %v180 = vshll.u32 2131351028, %v171
    %v181 = vshrl.u32 2102212464, %v172
    %v182 = vor.u32 %v180, %v181
    %v183 = vshll.u32 2102212464, %v171
    %v184 = vshrl.u32 920167782, %v172
    %v185 = vor.u32 %v183, %v184
    %v186 = vshll.u32 920167782, %v171
    %v187 = vshrl.u32 1326507024, %v172
    %v188 = vor.u32 %v186, %v187
    %vm189 = vcmp.lt.s32.totalorder %v170, 1
    %vm190 = vcmp.lt.s32.totalorder %v170, 2
    %vm191 = vcmp.lt.s32.totalorder %v170, 3
    %vm192 = vcmp.lt.s32.totalorder %v170, 4
    %v193 = vsel %vm189, %v173, %v176
    %v194 = vsel %vm192, %v182, 2102212464
    %v195 = vsel %vm191, %v179, %v194
    %v196 = vsel %vm190, %v193, %v195
    %v197 = vsel %vm189, %v176, %v179
    %v198 = vsel %vm192, %v185, 920167782
    %v199 = vsel %vm191, %v182, %v198
    %v200 = vsel %vm190, %v197, %v199
    %v201 = vsel %vm189, %v179, %v182
    %v202 = vsel %vm192, %v188, 1326507024
    %v203 = vsel %vm191, %v185, %v202
    %v204 = vsel %vm190, %v201, %v203
    %v205 = vshll.u32 %v165, 8
    %v206 = vmul.u32.u64.compose %v205, %v204
    %v207 = vextract.low.u32 %v206
    %v208 = vextract.high.u32 %v206
    %v209 = vmul.u32.u64.compose %v205, %v200
    %v210 = vextract.low.u32 %v209
    %v211 = vextract.high.u32 %v209
    %v212 = vmul.u32 %v205, %v196
    %v213 = vadd.s32 %v208, %v210
    %vm214 = vc.u32 %v208, %v210
    %v215 = vadd.s32 %v211, 1
    %v216 = vsel %vm214, %v215, %v211
    %v217 = vadd.s32 %v212, %v216
    %v218 = vadd.s32 %v217, 536870912
    %v219 = vshrl.u32 %v218, 30
    %v220 = vshll.u32 %v219, 30
    %v221 = vsub.s32 %v217, %v220
    %vm222 = vcmp.lt.s32.totalorder %v221, 0
    %v223 = vsub.s32 0, %v221
    %v224 = vsel %vm222, %v223, %v221
    %v225 = vclz %v224
    %v226 = vsub.s32 %v225, 2
    %vm227 = vcmp.gt.s32.totalorder 0, %v226
    %v228 = vsel %vm227, 0, %v226
    %v229 = vsub.s32 32, %v228
    %v230 = vshll.u32 %v221, %v228
    %v231 = vshrl.u32 %v213, %v229
    %v232 = vor.u32 %v230, %v231
    %v233 = vsub.s32 4294967266, %v228
    %v234 = vadd.s32 %v233, 127
    %v235 = vshll.u32 %v234, 23
    %v236 = vor.u32 4788187, %v235
    %v237 = vand.u32 2147483647, %v236
    %v239 = vcvt.s32.f32 %v232
    %v240 = vmul.f32 %v239, %v237
    %v241 = vxor.u32 %v240, 2147483648
    %v242 = vsel %vm159, %v241, %v240
    %v243 = vsub.s32 4, %v219
    %v244 = vsel %vm159, %v243, %v219
    %v245 = vsel %vm158, %v50, %v242
    %v246 = vsel %vm158, 0, %v244
    %v247 = vcosq.f32.pop %v245
    %v248 = vsinq.f32.pop %v245
    %vm249 = vweird.f32 %v50
    %v250 = vand.u32 %v246, 3
    %vm251 = vcmp.lt.s32.totalorder %v250, 2
    %vm252 = vcmp.eq.s32.totalorder %v250, 0
    %v253 = vxor.u32 %v248, 2147483648
    %v254 = vsel %vm252, %v247, %v253
    %vm255 = vcmp.eq.s32.totalorder %v250, 2
    %v256 = vxor.u32 %v247, 2147483648
    %v257 = vsel %vm255, %v256, %v248
    %v258 = vsel %vm251, %v254, %v257
    %v259 = vsel %vm249, nan, %v258
    %v260 = vand.u32 2147483647, %v51
    %vm261 = vcmp.le.f32.partialorder %v260, 0.7853982
    %vm262 = vcmp.lt.s32.totalorder %v51, 0
    %v263 = vand.u32 %v51, 2139095040
    %v264 = vshrl.u32 %v263, 23
    %v265 = vsub.s32 %v264, 127
    %v266 = vand.u32 2147483647, %v51
    %v267 = vand.u32 %v266, 8388607
    %v268 = vor.u32 %v267, 8388608
    %v269 = vsub.s32 0, %v268
    %v270 = vadd.s32 %v265, 1
    %vm271 = vcmp.gt.s32.totalorder %v270, 0
    %v272 = vsel %vm271, %v270, 0
    %v273 = vshrl.u32 %v272, 5
    %v274 = vand.u32 %v272, 31
    %v275 = vsub.s32 32, %v274
    %v276 = vshrl.u32 683565275, %v275
    %v277 = vshll.u32 683565275, %v274
    %v278 = vshrl.u32 2475754826, %v275
    %v279 = vor.u32 %v277, %v278
    %v280 = vshll.u32 2475754826, %v274
    %v281 = vshrl.u32 2131351028, %v275
    %v282 = vor.u32 %v280, %v281
    %v283 = vshll.u32 2131351028, %v274
    %v284 = vshrl.u32 2102212464, %v275
    %v285 = vor.u32 %v283, %v284
    %v286 = vshll.u32 2102212464, %v274
    %v287 = vshrl.u32 920167782, %v275
    %v288 = vor.u32 %v286, %v287
    %v289 = vshll.u32 920167782, %v274
    %v290 = vshrl.u32 1326507024, %v275
    %v291 = vor.u32 %v289, %v290
    %vm292 = vcmp.lt.s32.totalorder %v273, 1
    %vm293 = vcmp.lt.s32.totalorder %v273, 2
    %vm294 = vcmp.lt.s32.totalorder %v273, 3
    %vm295 = vcmp.lt.s32.totalorder %v273, 4
    %v296 = vsel %vm292, %v276, %v279
    %v297 = vsel %vm295, %v285, 2102212464
    %v298 = vsel %vm294, %v282, %v297
    %v299 = vsel %vm293, %v296, %v298
    %v300 = vsel %vm292, %v279, %v282
    %v301 = vsel %vm295, %v288, 920167782
    %v302 = vsel %vm294, %v285, %v301
    %v303 = vsel %vm293, %v300, %v302
    %v304 = vsel %vm292, %v282, %v285
    %v305 = vsel %vm295, %v291, 1326507024
    %v306 = vsel %vm294, %v288, %v305
    %v307 = vsel %vm293, %v304, %v306
    %v308 = vshll.u32 %v268, 8
    %v309 = vmul.u32.u64.compose %v308, %v307
    %v310 = vextract.low.u32 %v309
    %v311 = vextract.high.u32 %v309
    %v312 = vmul.u32.u64.compose %v308, %v303
    %v313 = vextract.low.u32 %v312
    %v314 = vextract.high.u32 %v312
    %v315 = vmul.u32 %v308, %v299
    %v316 = vadd.s32 %v311, %v313
    %vm317 = vc.u32 %v311, %v313
    %v318 = vadd.s32 %v314, 1
    %v319 = vsel %vm317, %v318, %v314
    %v320 = vadd.s32 %v315, %v319
    %v321 = vadd.s32 %v320, 536870912
    %v322 = vshrl.u32 %v321, 30
    %v323 = vshll.u32 %v322, 30
    %v324 = vsub.s32 %v320, %v323
    %vm325 = vcmp.lt.s32.totalorder %v324, 0
    %v326 = vsub.s32 0, %v324
    %v327 = vsel %vm325, %v326, %v324
    %v328 = vclz %v327
    %v329 = vsub.s32 %v328, 2
    %vm330 = vcmp.gt.s32.totalorder 0, %v329
    %v331 = vsel %vm330, 0, %v329
    %v332 = vsub.s32 32, %v331
    %v333 = vshll.u32 %v324, %v331
    %v334 = vshrl.u32 %v316, %v332
    %v335 = vor.u32 %v333, %v334
    %v336 = vsub.s32 4294967266, %v331
    %v337 = vadd.s32 %v336, 127
    %v338 = vshll.u32 %v337, 23
    %v339 = vor.u32 4788187, %v338
    %v340 = vand.u32 2147483647, %v339
    %v342 = vcvt.s32.f32 %v335
    %v343 = vmul.f32 %v342, %v340
    %v344 = vxor.u32 %v343, 2147483648
    %v345 = vsel %vm262, %v344, %v343
    %v346 = vsub.s32 4, %v322
    %v347 = vsel %vm262, %v346, %v322
    %v348 = vsel %vm261, %v51, %v345
    %v349 = vsel %vm261, 0, %v347
    %v350 = vcosq.f32.pop %v348
    %v351 = vsinq.f32.pop %v348
    %vm352 = vweird.f32 %v51
    %v353 = vand.u32 %v349, 3
    %vm354 = vcmp.lt.s32.totalorder %v353, 2
    %vm355 = vcmp.eq.s32.totalorder %v353, 0
    %v356 = vxor.u32 %v351, 2147483648
    %v357 = vsel %vm355, %v350, %v356
    %vm358 = vcmp.eq.s32.totalorder %v353, 2
    %v359 = vxor.u32 %v350, 2147483648
    %v360 = vsel %vm358, %v359, %v351
    %v361 = vsel %vm354, %v357, %v360
    %v362 = vsel %vm352, nan, %v361
    %v363 = vand.u32 2147483647, %v49
    %vm364 = vcmp.le.f32.partialorder %v363, 0.7853982
    %vm365 = vcmp.lt.s32.totalorder %v49, 0
    %v366 = vand.u32 %v49, 2139095040
    %v367 = vshrl.u32 %v366, 23
    %v368 = vsub.s32 %v367, 127
    %v369 = vand.u32 2147483647, %v49
    %v370 = vand.u32 %v369, 8388607
    %v371 = vor.u32 %v370, 8388608
    %v372 = vsub.s32 0, %v371
    %v373 = vadd.s32 %v368, 1
    %vm374 = vcmp.gt.s32.totalorder %v373, 0
    %v375 = vsel %vm374, %v373, 0
    %v376 = vshrl.u32 %v375, 5
    %v377 = vand.u32 %v375, 31
    %v378 = vsub.s32 32, %v377
    %v379 = vshrl.u32 683565275, %v378
    %v380 = vshll.u32 683565275, %v377
    %v381 = vshrl.u32 2475754826, %v378
    %v382 = vor.u32 %v380, %v381
    %v383 = vshll.u32 2475754826, %v377
    %v384 = vshrl.u32 2131351028, %v378
    %v385 = vor.u32 %v383, %v384
    %v386 = vshll.u32 2131351028, %v377
    %v387 = vshrl.u32 2102212464, %v378
    %v388 = vor.u32 %v386, %v387
    %v389 = vshll.u32 2102212464, %v377
    %v390 = vshrl.u32 920167782, %v378
    %v391 = vor.u32 %v389, %v390
    %v392 = vshll.u32 920167782, %v377
    %v393 = vshrl.u32 1326507024, %v378
    %v394 = vor.u32 %v392, %v393
    %vm395 = vcmp.lt.s32.totalorder %v376, 1
    %vm396 = vcmp.lt.s32.totalorder %v376, 2
    %vm397 = vcmp.lt.s32.totalorder %v376, 3
    %vm398 = vcmp.lt.s32.totalorder %v376, 4
    %v399 = vsel %vm395, %v379, %v382
    %v400 = vsel %vm398, %v388, 2102212464
    %v401 = vsel %vm397, %v385, %v400
    %v402 = vsel %vm396, %v399, %v401
    %v403 = vsel %vm395, %v382, %v385
    %v404 = vsel %vm398, %v391, 920167782
    %v405 = vsel %vm397, %v388, %v404
    %v406 = vsel %vm396, %v403, %v405
    %v407 = vsel %vm395, %v385, %v388
    %v408 = vsel %vm398, %v394, 1326507024
    %v409 = vsel %vm397, %v391, %v408
    %v410 = vsel %vm396, %v407, %v409
    %v411 = vshll.u32 %v371, 8
    %v412 = vmul.u32.u64.compose %v411, %v410
    %v413 = vextract.low.u32 %v412
    %v414 = vextract.high.u32 %v412
    %v415 = vmul.u32.u64.compose %v411, %v406
    %v416 = vextract.low.u32 %v415
    %v417 = vextract.high.u32 %v415
    %v418 = vmul.u32 %v411, %v402
    %v419 = vadd.s32 %v414, %v416
    %vm420 = vc.u32 %v414, %v416
    %v421 = vadd.s32 %v417, 1
    %v422 = vsel %vm420, %v421, %v417
    %v423 = vadd.s32 %v418, %v422
    %v424 = vadd.s32 %v423, 536870912
    %v425 = vshrl.u32 %v424, 30
    %v426 = vshll.u32 %v425, 30
    %v427 = vsub.s32 %v423, %v426
    %vm428 = vcmp.lt.s32.totalorder %v427, 0
    %v429 = vsub.s32 0, %v427
    %v430 = vsel %vm428, %v429, %v427
    %v431 = vclz %v430
    %v432 = vsub.s32 %v431, 2
    %vm433 = vcmp.gt.s32.totalorder 0, %v432
    %v434 = vsel %vm433, 0, %v432
    %v435 = vsub.s32 32, %v434
    %v436 = vshll.u32 %v427, %v434
    %v437 = vshrl.u32 %v419, %v435
    %v438 = vor.u32 %v436, %v437
    %v439 = vsub.s32 4294967266, %v434
    %v440 = vadd.s32 %v439, 127
    %v441 = vshll.u32 %v440, 23
    %v442 = vor.u32 4788187, %v441
    %v443 = vand.u32 2147483647, %v442
    %v445 = vcvt.s32.f32 %v438
    %v446 = vmul.f32 %v445, %v443
    %v447 = vxor.u32 %v446, 2147483648
    %v448 = vsel %vm365, %v447, %v446
    %v449 = vsub.s32 4, %v425
    %v450 = vsel %vm365, %v449, %v425
    %v451 = vsel %vm364, %v49, %v448
    %v452 = vsel %vm364, 0, %v450
    %v453 = vcosq.f32.pop %v451
    %v454 = vsinq.f32.pop %v451
    %vm455 = vweird.f32 %v49
    %v456 = vadd.s32 %v452, 3
    %v457 = vand.u32 %v456, 3
    %vm458 = vcmp.lt.s32.totalorder %v457, 2
    %vm459 = vcmp.eq.s32.totalorder %v457, 0
    %v460 = vxor.u32 %v454, 2147483648
    %v461 = vsel %vm459, %v453, %v460
    %vm462 = vcmp.eq.s32.totalorder %v457, 2
    %v463 = vxor.u32 %v453, 2147483648
    %v464 = vsel %vm462, %v463, %v454
    %v465 = vsel %vm458, %v461, %v464
    %v466 = vsel %vm455, nan, %v465
    %v467 = vand.u32 2147483647, %v50
    %vm468 = vcmp.le.f32.partialorder %v467, 0.7853982
    %vm469 = vcmp.lt.s32.totalorder %v50, 0
    %v470 = vand.u32 %v50, 2139095040
    %v471 = vshrl.u32 %v470, 23
    %v472 = vsub.s32 %v471, 127
    %v473 = vand.u32 2147483647, %v50
    %v474 = vand.u32 %v473, 8388607
    %v475 = vor.u32 %v474, 8388608
    %v476 = vsub.s32 0, %v475
    %v477 = vadd.s32 %v472, 1
    %vm478 = vcmp.gt.s32.totalorder %v477, 0
    %v479 = vsel %vm478, %v477, 0
    %v480 = vshrl.u32 %v479, 5
    %v481 = vand.u32 %v479, 31
    %v482 = vsub.s32 32, %v481
    %v483 = vshrl.u32 683565275, %v482
    %v484 = vshll.u32 683565275, %v481
    %v485 = vshrl.u32 2475754826, %v482
    %v486 = vor.u32 %v484, %v485
    %v487 = vshll.u32 2475754826, %v481
    %v488 = vshrl.u32 2131351028, %v482
    %v489 = vor.u32 %v487, %v488
    %v490 = vshll.u32 2131351028, %v481
    %v491 = vshrl.u32 2102212464, %v482
    %v492 = vor.u32 %v490, %v491
    %v493 = vshll.u32 2102212464, %v481
    %v494 = vshrl.u32 920167782, %v482
    %v495 = vor.u32 %v493, %v494
    %v496 = vshll.u32 920167782, %v481
    %v497 = vshrl.u32 1326507024, %v482
    %v498 = vor.u32 %v496, %v497
    %vm499 = vcmp.lt.s32.totalorder %v480, 1
    %vm500 = vcmp.lt.s32.totalorder %v480, 2
    %vm501 = vcmp.lt.s32.totalorder %v480, 3
    %vm502 = vcmp.lt.s32.totalorder %v480, 4
    %v503 = vsel %vm499, %v483, %v486
    %v504 = vsel %vm502, %v492, 2102212464
    %v505 = vsel %vm501, %v489, %v504
    %v506 = vsel %vm500, %v503, %v505
    %v507 = vsel %vm499, %v486, %v489
    %v508 = vsel %vm502, %v495, 920167782
    %v509 = vsel %vm501, %v492, %v508
    %v510 = vsel %vm500, %v507, %v509
    %v511 = vsel %vm499, %v489, %v492
    %v512 = vsel %vm502, %v498, 1326507024
    %v513 = vsel %vm501, %v495, %v512
    %v514 = vsel %vm500, %v511, %v513
    %v515 = vshll.u32 %v475, 8
    %v516 = vmul.u32.u64.compose %v515, %v514
    %v517 = vextract.low.u32 %v516
    %v518 = vextract.high.u32 %v516
    %v519 = vmul.u32.u64.compose %v515, %v510
    %v520 = vextract.low.u32 %v519
    %v521 = vextract.high.u32 %v519
    %v522 = vmul.u32 %v515, %v506
    %v523 = vadd.s32 %v518, %v520
    %vm524 = vc.u32 %v518, %v520
    %v525 = vadd.s32 %v521, 1
    %v526 = vsel %vm524, %v525, %v521
    %v527 = vadd.s32 %v522, %v526
    %v528 = vadd.s32 %v527, 536870912
    %v529 = vshrl.u32 %v528, 30
    %v530 = vshll.u32 %v529, 30
    %v531 = vsub.s32 %v527, %v530
    %vm532 = vcmp.lt.s32.totalorder %v531, 0
    %v533 = vsub.s32 0, %v531
    %v534 = vsel %vm532, %v533, %v531
    %v535 = vclz %v534
    %v536 = vsub.s32 %v535, 2
    %vm537 = vcmp.gt.s32.totalorder 0, %v536
    %v538 = vsel %vm537, 0, %v536
    %v539 = vsub.s32 32, %v538
    %v540 = vshll.u32 %v531, %v538
    %v541 = vshrl.u32 %v523, %v539
    %v542 = vor.u32 %v540, %v541
    %v543 = vsub.s32 4294967266, %v538
    %v544 = vadd.s32 %v543, 127
    %v545 = vshll.u32 %v544, 23
    %v546 = vor.u32 4788187, %v545
    %v547 = vand.u32 2147483647, %v546
    %v549 = vcvt.s32.f32 %v542
    %v550 = vmul.f32 %v549, %v547
    %v551 = vxor.u32 %v550, 2147483648
    %v552 = vsel %vm469, %v551, %v550
    %v553 = vsub.s32 4, %v529
    %v554 = vsel %vm469, %v553, %v529
    %v555 = vsel %vm468, %v50, %v552
    %v556 = vsel %vm468, 0, %v554
    %v557 = vcosq.f32.pop %v555
    %v558 = vsinq.f32.pop %v555
    %vm559 = vweird.f32 %v50
    %v560 = vadd.s32 %v556, 3
    %v561 = vand.u32 %v560, 3
    %vm562 = vcmp.lt.s32.totalorder %v561, 2
    %vm563 = vcmp.eq.s32.totalorder %v561, 0
    %v564 = vxor.u32 %v558, 2147483648
    %v565 = vsel %vm563, %v557, %v564
    %vm566 = vcmp.eq.s32.totalorder %v561, 2
    %v567 = vxor.u32 %v557, 2147483648
    %v568 = vsel %vm566, %v567, %v558
    %v569 = vsel %vm562, %v565, %v568
    %v570 = vsel %vm559, nan, %v569
    %v571 = vand.u32 2147483647, %v51
    %vm572 = vcmp.le.f32.partialorder %v571, 0.7853982
    %vm573 = vcmp.lt.s32.totalorder %v51, 0
    %v574 = vand.u32 %v51, 2139095040
    %v575 = vshrl.u32 %v574, 23
    %v576 = vsub.s32 %v575, 127
    %v577 = vand.u32 2147483647, %v51
    %v578 = vand.u32 %v577, 8388607
    %v579 = vor.u32 %v578, 8388608
    %v580 = vsub.s32 0, %v579
    %v581 = vadd.s32 %v576, 1
    %vm582 = vcmp.gt.s32.totalorder %v581, 0
    %v583 = vsel %vm582, %v581, 0
    %v584 = vshrl.u32 %v583, 5
    %v585 = vand.u32 %v583, 31
    %v586 = vsub.s32 32, %v585
    %v587 = vshrl.u32 683565275, %v586
    %v588 = vshll.u32 683565275, %v585
    %v589 = vshrl.u32 2475754826, %v586
    %v590 = vor.u32 %v588, %v589
    %v591 = vshll.u32 2475754826, %v585
    %v592 = vshrl.u32 2131351028, %v586
    %v593 = vor.u32 %v591, %v592
    %v594 = vshll.u32 2131351028, %v585
    %v595 = vshrl.u32 2102212464, %v586
    %v596 = vor.u32 %v594, %v595
    %v597 = vshll.u32 2102212464, %v585
    %v598 = vshrl.u32 920167782, %v586
    %v599 = vor.u32 %v597, %v598
    %v600 = vshll.u32 920167782, %v585
    %v601 = vshrl.u32 1326507024, %v586
    %v602 = vor.u32 %v600, %v601
    %vm603 = vcmp.lt.s32.totalorder %v584, 1
    %vm604 = vcmp.lt.s32.totalorder %v584, 2
    %vm605 = vcmp.lt.s32.totalorder %v584, 3
    %vm606 = vcmp.lt.s32.totalorder %v584, 4
    %v607 = vsel %vm603, %v587, %v590
    %v608 = vsel %vm606, %v596, 2102212464
    %v609 = vsel %vm605, %v593, %v608
    %v610 = vsel %vm604, %v607, %v609
    %v611 = vsel %vm603, %v590, %v593
    %v612 = vsel %vm606, %v599, 920167782
    %v613 = vsel %vm605, %v596, %v612
    %v614 = vsel %vm604, %v611, %v613
    %v615 = vsel %vm603, %v593, %v596
    %v616 = vsel %vm606, %v602, 1326507024
    %v617 = vsel %vm605, %v599, %v616
    %v618 = vsel %vm604, %v615, %v617
    %v619 = vshll.u32 %v579, 8
    %v620 = vmul.u32.u64.compose %v619, %v618
    %v621 = vextract.low.u32 %v620
    %v622 = vextract.high.u32 %v620
    %v623 = vmul.u32.u64.compose %v619, %v614
    %v624 = vextract.low.u32 %v623
    %v625 = vextract.high.u32 %v623
    %v626 = vmul.u32 %v619, %v610
    %v627 = vadd.s32 %v622, %v624
    %vm628 = vc.u32 %v622, %v624
    %v629 = vadd.s32 %v625, 1
    %v630 = vsel %vm628, %v629, %v625
    %v631 = vadd.s32 %v626, %v630
    %v632 = vadd.s32 %v631, 536870912
    %v633 = vshrl.u32 %v632, 30
    %v634 = vshll.u32 %v633, 30
    %v635 = vsub.s32 %v631, %v634
    %vm636 = vcmp.lt.s32.totalorder %v635, 0
    %v637 = vsub.s32 0, %v635
    %v638 = vsel %vm636, %v637, %v635
    %v639 = vclz %v638
    %v640 = vsub.s32 %v639, 2
    %vm641 = vcmp.gt.s32.totalorder 0, %v640
    %v642 = vsel %vm641, 0, %v640
    %v643 = vsub.s32 32, %v642
    %v644 = vshll.u32 %v635, %v642
    %v645 = vshrl.u32 %v627, %v643
    %v646 = vor.u32 %v644, %v645
    %v647 = vsub.s32 4294967266, %v642
    %v648 = vadd.s32 %v647, 127
    %v649 = vshll.u32 %v648, 23
    %v650 = vor.u32 4788187, %v649
    %v651 = vand.u32 2147483647, %v650
    %v653 = vcvt.s32.f32 %v646
    %v654 = vmul.f32 %v653, %v651
    %v655 = vxor.u32 %v654, 2147483648
    %v656 = vsel %vm573, %v655, %v654
    %v657 = vsub.s32 4, %v633
    %v658 = vsel %vm573, %v657, %v633
    %v659 = vsel %vm572, %v51, %v656
    %v660 = vsel %vm572, 0, %v658
    %v661 = vcosq.f32.pop %v659
    %v662 = vsinq.f32.pop %v659
    %vm663 = vweird.f32 %v51
    %v664 = vadd.s32 %v660, 3
    %v665 = vand.u32 %v664, 3
    %vm666 = vcmp.lt.s32.totalorder %v665, 2
    %vm667 = vcmp.eq.s32.totalorder %v665, 0
    %v668 = vxor.u32 %v662, 2147483648
    %v669 = vsel %vm667, %v661, %v668
    %vm670 = vcmp.eq.s32.totalorder %v665, 2
    %v671 = vxor.u32 %v661, 2147483648
    %v672 = vsel %vm670, %v671, %v662
    %v673 = vsel %vm666, %v669, %v672
    %v674 = vsel %vm663, nan, %v673
    %v675 = vmul.f32 %v156, 0.70710677
    %v676 = vmul.f32 %v466, 0.0
    %v677 = vadd.f32 %v675, %v676
    %v678 = vmul.f32 %v156, 0.0
    %v679 = vmul.f32 %v466, 0.70710677
    %v680 = vsub.f32 %v678, %v679
    %v681 = vsub.f32 %v675, %v676
    %v682 = vadd.f32 %v678, %v679
    %v684 = vrot.slane %v677, 4
    %v686 = vmul.f32 %v156, %v684
    %v688 = vrot.slane %v681, 4
    %v690 = vmul.f32 %v466, %v688
    %v691 = vsub.f32 %v686, %v690
    %v693 = vrot.slane %v680, 4
    %v695 = vmul.f32 %v156, %v693
    %v697 = vrot.slane %v682, 4
    %v699 = vmul.f32 %v466, %v697
    %v700 = vsub.f32 %v695, %v699
    %v701 = vmul.f32 %v466, %v684
    %v702 = vmul.f32 %v156, %v688
    %v703 = vadd.f32 %v701, %v702
    %v704 = vmul.f32 %v466, %v693
    %v705 = vmul.f32 %v156, %v697
    %v706 = vadd.f32 %v704, %v705
    %v708 = vrot.slane %v259, 4
    %v710 = vmul.f32 %v691, %v708
    %v712 = vrot.slane %v570, 4
    %v714 = vmul.f32 %v700, %v712
    %v715 = vadd.f32 %v710, %v714
    %v716 = vmul.f32 %v700, %v708
    %v717 = vmul.f32 %v691, %v712
    %v718 = vsub.f32 %v716, %v717
    %v719 = vmul.f32 %v703, %v708
    %v720 = vmul.f32 %v706, %v712
    %v721 = vsub.f32 %v719, %v720
    %v722 = vmul.f32 %v706, %v708
    %v723 = vmul.f32 %v703, %v712
    %v724 = vadd.f32 %v722, %v723
    %v725 = vmul.f32 %v259, %v715
    %v726 = vmul.f32 %v570, %v721
    %v727 = vsub.f32 %v725, %v726
    %v728 = vmul.f32 %v259, %v718
    %v729 = vmul.f32 %v570, %v724
    %v730 = vsub.f32 %v728, %v729
    %v731 = vmul.f32 %v570, %v715
    %v732 = vmul.f32 %v259, %v721
    %v733 = vadd.f32 %v731, %v732
    %v734 = vmul.f32 %v570, %v718
    %v735 = vmul.f32 %v259, %v724
    %v736 = vadd.f32 %v734, %v735
    %v738 = vrot.slane %v362, 4
    %v740 = vmul.f32 %v727, %v738
    %v742 = vrot.slane %v674, 4
    %v744 = vmul.f32 %v730, %v742
    %v745 = vadd.f32 %v740, %v744
    %v746 = vmul.f32 %v730, %v738
    %v747 = vmul.f32 %v727, %v742
    %v748 = vsub.f32 %v746, %v747
    %v749 = vmul.f32 %v733, %v738
    %v750 = vmul.f32 %v736, %v742
    %v751 = vsub.f32 %v749, %v750
    %v752 = vmul.f32 %v736, %v738
    %v753 = vmul.f32 %v733, %v742
    %v754 = vadd.f32 %v752, %v753
    %v755 = vlaneseq
    %v756 = vshrl.u32 %v755, 7
    %v757 = vadd.s32 %v756, 8
    %v758 = vshra.s32 %v756, 3
    %v759 = vshra.s32 %v757, 3
    %v760 = vand.u32 %v758, 1
    %v761 = vand.u32 %v759, 1
    %vm762 = vcmp.eq.s32.totalorder %v760, 0
    %vm763 = vcmp.eq.s32.totalorder %v761, 0
    %v764 = vlaneseq
    %v765 = vshrl.u32 %v764, 7
    %v766 = vsub.s32 4, %v765
    %v767 = vrot.slane %v745, %v766
    %v768 = vlaneseq
    %v769 = vshrl.u32 %v768, 7
    %v770 = vsub.s32 4, %v769
    %v771 = vrot.slane %v751, %v770
    %v772 = vsel %vm762, %v767, %v771
    %v773 = vsel %vm763, %v767, %v771
    %v774 = vlaneseq
    %v775 = vshrl.u32 %v774, 7
    %v776 = vsub.s32 4, %v775
    %v777 = vrot.slane %v748, %v776
    %v778 = vlaneseq
    %v779 = vshrl.u32 %v778, 7
    %v780 = vsub.s32 4, %v779
    %v781 = vrot.slane %v754, %v780
    %v782 = vsel %vm762, %v777, %v781
    %v783 = vsel %vm763, %v777, %v781
    %v784 = vshra.s32 %v756, 2
    %v785 = vshra.s32 %v757, 2
    %v786 = vand.u32 %v784, 1
    %v787 = vand.u32 %v785, 1
    %vm788 = vcmp.eq.s32.totalorder %v786, 0
    %vm789 = vcmp.eq.s32.totalorder %v787, 0
    %v790 = vlaneseq
    %v791 = vshrl.u32 %v790, 7
    %v792 = vsub.s32 5, %v791
    %v793 = vrot.slane %v745, %v792
    %v794 = vlaneseq
    %v795 = vshrl.u32 %v794, 7
    %v796 = vsub.s32 5, %v795
    %v797 = vrot.slane %v751, %v796
    %v798 = vsel %vm788, %v793, %v797
    %v799 = vsel %vm789, %v793, %v797
    %v800 = vlaneseq
    %v801 = vshrl.u32 %v800, 7
    %v802 = vsub.s32 5, %v801
    %v803 = vrot.slane %v748, %v802
    %v804 = vlaneseq
    %v805 = vshrl.u32 %v804, 7
    %v806 = vsub.s32 5, %v805
    %v807 = vrot.slane %v754, %v806
    %v808 = vsel %vm788, %v803, %v807
    %v809 = vsel %vm789, %v803, %v807
    %v810 = vmul.f32 %v772, %v798
    %v811 = vmul.f32 %v773, %v799
    %v812 = vmul.f32 %v782, %v808
    %v813 = vmul.f32 %v783, %v809
    %v814 = vsub.f32 %v810, %v812
    %v815 = vsub.f32 %v811, %v813
    %v816 = vmul.f32 %v772, %v808
    %v817 = vmul.f32 %v773, %v809
    %v818 = vmul.f32 %v782, %v798
    %v819 = vmul.f32 %v783, %v799
    %v820 = vadd.f32 %v816, %v818
    %v821 = vadd.f32 %v817, %v819
    %v822 = vshra.s32 %v756, 1
    %v823 = vshra.s32 %v757, 1
    %v824 = vand.u32 %v822, 1
    %v825 = vand.u32 %v823, 1
    %vm826 = vcmp.eq.s32.totalorder %v824, 0
    %vm827 = vcmp.eq.s32.totalorder %v825, 0
    %v828 = vlaneseq
    %v829 = vshrl.u32 %v828, 7
    %v830 = vsub.s32 6, %v829
    %v831 = vrot.slane %v745, %v830
    %v832 = vlaneseq
    %v833 = vshrl.u32 %v832, 7
    %v834 = vsub.s32 6, %v833
    %v835 = vrot.slane %v751, %v834
    %v836 = vsel %vm826, %v831, %v835
    %v837 = vsel %vm827, %v831, %v835
    %v838 = vlaneseq
    %v839 = vshrl.u32 %v838, 7
    %v840 = vsub.s32 6, %v839
    %v841 = vrot.slane %v748, %v840
    %v842 = vlaneseq
    %v843 = vshrl.u32 %v842, 7
    %v844 = vsub.s32 6, %v843
    %v845 = vrot.slane %v754, %v844
    %v846 = vsel %vm826, %v841, %v845
    %v847 = vsel %vm827, %v841, %v845
    %v848 = vmul.f32 %v814, %v836
    %v849 = vmul.f32 %v815, %v837
    %v850 = vmul.f32 %v820, %v846
    %v851 = vmul.f32 %v821, %v847
    %v852 = vsub.f32 %v848, %v850
    %v853 = vsub.f32 %v849, %v851
    %v854 = vmul.f32 %v814, %v846
    %v855 = vmul.f32 %v815, %v847
    %v856 = vmul.f32 %v820, %v836
    %v857 = vmul.f32 %v821, %v837
    %v858 = vadd.f32 %v854, %v856
    %v859 = vadd.f32 %v855, %v857
    %v860 = vand.u32 %v756, 1
    %v861 = vand.u32 %v757, 1
    %vm862 = vcmp.eq.s32.totalorder %v860, 0
    %vm863 = vcmp.eq.s32.totalorder %v861, 0
    %v864 = vlaneseq
    %v865 = vshrl.u32 %v864, 7
    %v866 = vsub.s32 7, %v865
    %v867 = vrot.slane %v745, %v866
    %v868 = vlaneseq
    %v869 = vshrl.u32 %v868, 7
    %v870 = vsub.s32 7, %v869
    %v871 = vrot.slane %v751, %v870
    %v872 = vsel %vm862, %v867, %v871
    %v873 = vsel %vm863, %v867, %v871
    %v874 = vlaneseq
    %v875 = vshrl.u32 %v874, 7
    %v876 = vsub.s32 7, %v875
    %v877 = vrot.slane %v748, %v876
    %v878 = vlaneseq
    %v879 = vshrl.u32 %v878, 7
    %v880 = vsub.s32 7, %v879
    %v881 = vrot.slane %v754, %v880
    %v882 = vsel %vm862, %v877, %v881
    %v883 = vsel %vm863, %v877, %v881
    %v884 = vmul.f32 %v852, %v872
    %v885 = vmul.f32 %v853, %v873
    %v886 = vmul.f32 %v858, %v882
    %v887 = vmul.f32 %v859, %v883
    %v888 = vsub.f32 %v884, %v886
    %v889 = vsub.f32 %v885, %v887
    %v890 = vmul.f32 %v852, %v882
    %v891 = vmul.f32 %v853, %v883
    %v892 = vmul.f32 %v858, %v872
    %v893 = vmul.f32 %v859, %v873
    %v894 = vadd.f32 %v890, %v892
    %v895 = vadd.f32 %v891, %v893
    %v896 = vld [vmem:[#allocation5] sm:$0xff]
    %v897 = vld [vmem:[#allocation5 + $0x8] sm:$0xff]
    %v898 = vld [vmem:[#allocation5 + $0x10] sm:$0xff]
    %v899 = vld [vmem:[#allocation5 + $0x18] sm:$0xff]
    %vm900 = vcmask 261120
    %v902 = vsel %vm900, %v896, 0
    %v905 = vsel %vm900, %v897, 0
    %v908 = vsel %vm900, %v898, 0
    %v911 = vsel %vm900, %v899, 0
    %913 = vmatprep.subr.mxu0 0.0
    %914 = vmatpush1.msra.mxu0 %v888
    %915 = vmatprep.subr.mxu0 0.0
    %916 = vmatpush1.msra.mxu0 %v889
    %917 = vmatprep.subr.mxu0 0.0
    %918 = vmatpush1.msra.mxu0 %v894
    %919 = vmatprep.subr.mxu0 0.0
    %920 = vmatpush1.msra.mxu0 %v895
    %921 = vmatprep.subr.mxu0 0.0
    %922 = vmatpush1.msra.mxu0 0.0
    %923 = vmatprep.subr.mxu0 0.0
    %924 = vmatpush1.msra.mxu0 0.0
    %925 = vmatprep.subr.mxu0 0.0
    %926 = vmatpush1.msra.mxu0 0.0
    %927 = vmatprep.subr.mxu0 0.0
    %928 = vmatpush1.msra.mxu0 0.0
    %929 = vmatprep.subr.mxu0 0.0
    %930 = vmatpush1.msra.mxu0 0.0
    %931 = vmatprep.subr.mxu0 0.0
    %932 = vmatpush1.msra.mxu0 0.0
    %933 = vmatprep.subr.mxu0 0.0
    %934 = vmatpush1.msra.mxu0 0.0
    %935 = vmatprep.subr.mxu0 0.0
    %936 = vmatpush1.msra.mxu0 0.0
    %937 = vmatprep.subr.mxu0 0.0
    %938 = vmatpush1.msra.mxu0 0.0
    %939 = vmatprep.subr.mxu0 0.0
    %940 = vmatpush1.msra.mxu0 0.0
    %941 = vmatprep.subr.mxu0 0.0
    %942 = vmatpush1.msra.mxu0 0.0
    %943 = vmatprep.subr.mxu0 0.0
    %944 = vmatpush1.msra.mxu0 0.0
    %945 = vmatprep.subr.mxu0 0.0
    %946 = vmatpush1.msra.mxu0 0.0
    %947 = vmatprep.subr.mxu0 0.0
    %948 = vmatpush1.msra.mxu0 0.0
    %949 = vmatprep.subr.mxu0 0.0
    %950 = vmatpush1.msra.mxu0 0.0
    %951 = vmatprep.subr.mxu0 0.0
    %952 = vmatpush1.msra.mxu0 0.0
    %953 = vmatprep.subr.mxu0 0.0
    %954 = vmatpush1.msra.mxu0 0.0
    %955 = vmatprep.subr.mxu0 0.0
    %956 = vmatpush1.msra.mxu0 0.0
    %957 = vmatprep.subr.mxu0 0.0
    %958 = vmatpush1.msra.mxu0 0.0
    %959 = vmatprep.subr.mxu0 0.0
    %960 = vmatpush1.msra.mxu0 0.0
    %961 = vmatprep.subr.mxu0 0.0
    %962 = vmatpush1.msra.mxu0 0.0
    %963 = vmatprep.subr.mxu0 0.0
    %964 = vmatpush1.msra.mxu0 0.0
    %965 = vmatprep.subr.mxu0 0.0
    %966 = vmatpush1.msra.mxu0 0.0
    %967 = vmatprep.subr.mxu0 0.0
    %968 = vmatpush1.msra.mxu0 0.0
    %969 = vmatprep.subr.mxu0 0.0
    %970 = vmatpush1.msra.mxu0 0.0
    %971 = vmatprep.subr.mxu0 0.0
    %972 = vmatpush1.msra.mxu0 0.0
    %973 = vmatprep.subr.mxu0 0.0
    %974 = vmatpush1.msra.mxu0 0.0
    %975 = vmatprep.subr.mxu0 0.0
    %976 = vmatpush1.msra.mxu0 0.0
    %977 = vmatprep.mubr.f32.mxu0 0.0
    %978 = vmatmul.mubr.f32.gmra.mrb[0].mxu0 %v902
    %v979 = vpop.f32.mrb[0].mxu0
    %v980 = vadd.f32 0.0, %v979
    %v981 = vpop.f32.mrb[0].mxu0
    %982 = vmatprep.mubr.f32.mxu0 0.0
    %983 = vmatmul.mubr.f32.gmra.mrb[0].mxu0 %v905
    %v984 = vpop.f32.mrb[0].mxu0
    %v985 = vadd.f32 0.0, %v984
    %v986 = vpop.f32.mrb[0].mxu0
    %987 = vmatprep.mubr.f32.mxu0 0.0
    %988 = vmatmul.mubr.f32.gmra.mrb[0].mxu0 %v908
    %v989 = vpop.f32.mrb[0].mxu0
    %v990 = vadd.f32 0.0, %v989
    %v991 = vpop.f32.mrb[0].mxu0
    %992 = vmatprep.mubr.f32.mxu0 0.0
    %993 = vmatmul.mubr.f32.gmra.mrb[0].mxu0 %v911
    %v994 = vpop.f32.mrb[0].mxu0
    %v995 = vadd.f32 0.0, %v994
    %v996 = vpop.f32.mrb[0].mxu0
    %997 = vdwg.mxu0
    %v998 = vmul.f32 %v980, %v980
    %v999 = vmul.f32 %v985, %v985
    %v1000 = vmul.f32 %v990, %v990
    %v1001 = vmul.f32 %v995, %v995
    %v1002 = vadd.f32 %v998, %v1000
    %v1003 = vadd.f32 %v999, %v1001
    %v1004 = vld [vmem:[%s4] sm:$0xff]
    %v1005 = vld [vmem:[%s4 + $0x8] sm:$0xf]
    %vm1006 = vcmask 130048
    %v1008 = vsel %vm1006, %v1004, 0
    %v1011 = vsel %vm1006, %v1005, 0
    %1013 = vmatprep.subr.mxu0 0.0
    %1014 = vmatpush1.msra.mxu0 %v1002
    %1015 = vmatprep.subr.mxu0 0.0
    %1016 = vmatpush1.msra.mxu0 %v1003
    %1017 = vmatprep.subr.mxu0 0.0
    %1018 = vmatpush1.msra.mxu0 0.0
    %1019 = vmatprep.subr.mxu0 0.0
    %1020 = vmatpush1.msra.mxu0 0.0
    %1021 = vmatprep.subr.mxu0 0.0
    %1022 = vmatpush1.msra.mxu0 0.0
    %1023 = vmatprep.subr.mxu0 0.0
    %1024 = vmatpush1.msra.mxu0 0.0
    %1025 = vmatprep.subr.mxu0 0.0
    %1026 = vmatpush1.msra.mxu0 0.0
    %1027 = vmatprep.subr.mxu0 0.0
    %1028 = vmatpush1.msra.mxu0 0.0
    %1029 = vmatprep.subr.mxu0 0.0
    %1030 = vmatpush1.msra.mxu0 0.0
    %1031 = vmatprep.subr.mxu0 0.0
    %1032 = vmatpush1.msra.mxu0 0.0
    %1033 = vmatprep.subr.mxu0 0.0
    %1034 = vmatpush1.msra.mxu0 0.0
    %1035 = vmatprep.subr.mxu0 0.0
    %1036 = vmatpush1.msra.mxu0 0.0
    %1037 = vmatprep.subr.mxu0 0.0
    %1038 = vmatpush1.msra.mxu0 0.0
    %1039 = vmatprep.subr.mxu0 0.0
    %1040 = vmatpush1.msra.mxu0 0.0
    %1041 = vmatprep.subr.mxu0 0.0
    %1042 = vmatpush1.msra.mxu0 0.0
    %1043 = vmatprep.subr.mxu0 0.0
    %1044 = vmatpush1.msra.mxu0 0.0
    %1045 = vmatprep.subr.mxu0 0.0
    %1046 = vmatpush1.msra.mxu0 0.0
    %1047 = vmatprep.subr.mxu0 0.0
    %1048 = vmatpush1.msra.mxu0 0.0
    %1049 = vmatprep.subr.mxu0 0.0
    %1050 = vmatpush1.msra.mxu0 0.0
    %1051 = vmatprep.subr.mxu0 0.0
    %1052 = vmatpush1.msra.mxu0 0.0
    %1053 = vmatprep.subr.mxu0 0.0
    %1054 = vmatpush1.msra.mxu0 0.0
    %1055 = vmatprep.subr.mxu0 0.0
    %1056 = vmatpush1.msra.mxu0 0.0
    %1057 = vmatprep.subr.mxu0 0.0
    %1058 = vmatpush1.msra.mxu0 0.0
    %1059 = vmatprep.subr.mxu0 0.0
    %1060 = vmatpush1.msra.mxu0 0.0
    %1061 = vmatprep.subr.mxu0 0.0
    %1062 = vmatpush1.msra.mxu0 0.0
    %1063 = vmatprep.subr.mxu0 0.0
    %1064 = vmatpush1.msra.mxu0 0.0
    %1065 = vmatprep.subr.mxu0 0.0
    %1066 = vmatpush1.msra.mxu0 0.0
    %1067 = vmatprep.subr.mxu0 0.0
    %1068 = vmatpush1.msra.mxu0 0.0
    %1069 = vmatprep.subr.mxu0 0.0
    %1070 = vmatpush1.msra.mxu0 0.0
    %1071 = vmatprep.subr.mxu0 0.0
    %1072 = vmatpush1.msra.mxu0 0.0
    %1073 = vmatprep.subr.mxu0 0.0
    %1074 = vmatpush1.msra.mxu0 0.0
    %1075 = vmatprep.subr.mxu0 0.0
    %1076 = vmatpush1.msra.mxu0 0.0
    %1077 = vmatprep.mubr.f32.mxu0 0.0
    %1078 = vmatmul.mubr.f32.gmra.mrb[0].mxu0 %v1008
    %v1079 = vpop.f32.mrb[0].mxu0
    %v1080 = vadd.f32 0.0, %v1079
    %v1081 = vpop.f32.mrb[0].mxu0
    %1082 = vmatprep.mubr.f32.mxu0 0.0
    %1083 = vmatmul.mubr.f32.gmra.mrb[0].mxu0 %v1011
    %v1084 = vpop.f32.mrb[0].mxu0
    %v1085 = vadd.f32 0.0, %v1084
    %v1086 = vpop.f32.mrb[0].mxu0
    %1087 = vdwg.mxu0
    %vm1088 = vcmask 162816
    %v1090 = vsel %vm1088, %v52, 0
    %v1093 = vsel %vm1088, %v53, 0
    %vm1095 = vcmask 1043456
    %v1097 = vsel %vm1095, %v51, 0
    %1099 = vmatprep.subr.mxu0 0.0
    %1100 = vmatpush1.msra.mxu0 %v49
    %1101 = vmatprep.subr.mxu0 0.0
    %1102 = vmatpush1.msra.mxu0 %v50
    %1103 = vmatprep.subr.mxu0 0.0
    %1104 = vmatpush1.msra.mxu0 %v1097
    %1105 = vmatprep.subr.mxu0 0.0
    %1106 = vmatpush1.msra.mxu0 0.0
    %1107 = vmatprep.subr.mxu0 0.0
    %1108 = vmatpush1.msra.mxu0 0.0
    %1109 = vmatprep.subr.mxu0 0.0
    %1110 = vmatpush1.msra.mxu0 0.0
    %1111 = vmatprep.subr.mxu0 0.0
    %1112 = vmatpush1.msra.mxu0 0.0
    %1113 = vmatprep.subr.mxu0 0.0
    %1114 = vmatpush1.msra.mxu0 0.0
    %1115 = vmatprep.subr.mxu0 0.0
    %1116 = vmatpush1.msra.mxu0 0.0
    %1117 = vmatprep.subr.mxu0 0.0
    %1118 = vmatpush1.msra.mxu0 0.0
    %1119 = vmatprep.subr.mxu0 0.0
    %1120 = vmatpush1.msra.mxu0 0.0
    %1121 = vmatprep.subr.mxu0 0.0
    %1122 = vmatpush1.msra.mxu0 0.0
    %1123 = vmatprep.subr.mxu0 0.0
    %1124 = vmatpush1.msra.mxu0 0.0
    %1125 = vmatprep.subr.mxu0 0.0
    %1126 = vmatpush1.msra.mxu0 0.0
    %1127 = vmatprep.subr.mxu0 0.0
    %1128 = vmatpush1.msra.mxu0 0.0
    %1129 = vmatprep.subr.mxu0 0.0
    %1130 = vmatpush1.msra.mxu0 0.0
    %1131 = vmatprep.subr.mxu0 0.0
    %1132 = vmatpush1.msra.mxu0 0.0
    %1133 = vmatprep.subr.mxu0 0.0
    %1134 = vmatpush1.msra.mxu0 0.0
    %1135 = vmatprep.subr.mxu0 0.0
    %1136 = vmatpush1.msra.mxu0 0.0
    %1137 = vmatprep.subr.mxu0 0.0
    %1138 = vmatpush1.msra.mxu0 0.0
    %1139 = vmatprep.subr.mxu0 0.0
    %1140 = vmatpush1.msra.mxu0 0.0
    %1141 = vmatprep.subr.mxu0 0.0
    %1142 = vmatpush1.msra.mxu0 0.0
    %1143 = vmatprep.subr.mxu0 0.0
    %1144 = vmatpush1.msra.mxu0 0.0
    %1145 = vmatprep.subr.mxu0 0.0
    %1146 = vmatpush1.msra.mxu0 0.0
    %1147 = vmatprep.subr.mxu0 0.0
    %1148 = vmatpush1.msra.mxu0 0.0
    %1149 = vmatprep.subr.mxu0 0.0
    %1150 = vmatpush1.msra.mxu0 0.0
    %1151 = vmatprep.subr.mxu0 0.0
    %1152 = vmatpush1.msra.mxu0 0.0
    %1153 = vmatprep.subr.mxu0 0.0
    %1154 = vmatpush1.msra.mxu0 0.0
    %1155 = vmatprep.subr.mxu0 0.0
    %1156 = vmatpush1.msra.mxu0 0.0
    %1157 = vmatprep.subr.mxu0 0.0
    %1158 = vmatpush1.msra.mxu0 0.0
    %1159 = vmatprep.subr.mxu0 0.0
    %1160 = vmatpush1.msra.mxu0 0.0
    %1161 = vmatprep.subr.mxu0 0.0
    %1162 = vmatpush1.msra.mxu0 0.0
    %1163 = vmatprep.mubr.f32.mxu0 0.0
    %1164 = vmatmul.mubr.f32.gmra.mrb[0].mxu0 %v1090
    %v1165 = vpop.f32.mrb[0].mxu0
    %v1166 = vadd.f32 %v1080, %v1165
    %v1167 = vpop.f32.mrb[0].mxu0
    %1168 = vmatprep.mubr.f32.mxu0 0.0
    %1169 = vmatmul.mubr.f32.gmra.mrb[0].mxu0 %v1093
    %v1170 = vpop.f32.mrb[0].mxu0
    %v1171 = vadd.f32 %v1085, %v1170
    %v1172 = vpop.f32.mrb[0].mxu0
    %1173 = vdwg.mxu0
    %v1174 = vld [vmem:[%s2] sm:$0xff]
    %v1175 = vld [vmem:[%s2 + $0x8] sm:$0xf]
    %1177 = vset.pattern.permute.xlu0 0
    %1178 = vperm.xlu0 %1177, %v1174
    %v1179 = vpop.permute.xlu0 %1178
    %1182 = vset.pattern.permute.xlu0 0
    %1183 = vperm.xlu0 %1182, %v1175
    %v1184 = vpop.permute.xlu0 %1183
    %v1186 = vadd.f32 %v1166, %v1179
    %v1187 = vadd.f32 %v1171, %v1184
    %1188 = vst [vmem:[#allocation7] sm:$0xff] %v1186
    %1189 = vst [vmem:[#allocation7 + $0x8] sm:$0xf] %v1187
    // Predicated region
    $region30: #{tpu_custom_call.1} parent=1 // pred_check
      _
    $region31: #{tpu_custom_call.1} parent=1 // pred_check_branch
      %1191 = sbr.rel (0) target = $region33
    $region32: #{tpu_custom_call.1} parent=1 // pred_region
      %s1193 = ssub.s32 256, 256
      %1194 = vsyncadd [#allocation4], %s1193
      %s1195 = sshll.u32 [#allocation7], 4
      %s1196 = int_to_ptr.vmem [resolvable:$true] %s1195
      %1201 = dma.vmem_to_hbm [thread:$0]  %s1196, 256, %s5, [#allocation4], 128, 128, 8
    $region33: #{tpu_custom_call.1} parent=1 // pred_fallthru
      _
    // Predicated region
    $region34: #{tpu_custom_call.1} parent=1 // pred_check
      _
    $region35: #{tpu_custom_call.1} parent=1 // pred_check_branch
      %1203 = sbr.rel (0) target = $region37
    $region36: #{tpu_custom_call.1} parent=1 // pred_region
      %1204 = dma.done [#allocation4], 256
    $region37: #{tpu_custom_call.1} parent=1 // pred_fallthru
      _
    %1205 = vsyncpa [#allocation3], 1
    %1206 = vsyncpa [#allocation6], 1
    %1207 = vsyncpa [#allocation4], 1

</llo_original>
